<compile_context>
chip_gen: v6e
topology: v6e:2x2x1
jax: 0.10.0
libtpu: 0.0.40
codegen_flags: <defaults>
</compile_context>

<pallas_src>
import functools
import math

import jax
import jax.numpy as jnp
from jax.experimental import pallas as pl
from jax.experimental.pallas import tpu as pltpu


# Output rows of the final (B, T2, odim) tensor produced per grid step.
# Review guidance: 128 on v6e / v5e; prefer 64 (or 32) on v7x at odim >= 512.
DEFAULT_TIME_TILE = 128


def _round_up(n, m):
    return ((n + m - 1) // m) * m


# ------------------------------- Pallas kernel ------------------------------ #

def _fused_subsample_kernel(xm_ref, xh_ref, w1_ref, b1_ref, w2_ref, b2_ref,
                            wl_ref, pe_ref, y_ref, se_ref, so_ref, ss_ref,
                            *, tt2, F2, G):
    """conv1+ReLU+conv2+ReLU+flatten+Linear+xscale+PE for one (batch, time) tile.

    xm_ref : (1, 2*tt2, 2G, 9) f32  conv1 tap patches for conv1 rows
                                    [2*t2_start, 2*t2_start + 2*tt2); freq axis
                                    grouped [even f1=2g | odd f1=2g+1], padded.
    xh_ref : (1, 1, 2G, 9)     f32  one halo row (conv1 row 2*t2_start + 2*tt2).
    w1_ref : (9, odim)         bf16 w1[c, 0, kh, kw] at row 3*kh + kw.
    b1_ref : (1, odim)         f32
    w2_ref : (9, odim, odim)   bf16 w2[:, :, kh, kw].T at index 3*kh + kw.
    b2_ref : (1, odim)         f32
    wl_ref : (F2, odim, odim)  bf16 linear weight per conv2 freq column,
                                    pre-scaled by xscale.
    pe_ref : (tt2, odim)       f32  positional-encoding rows + xscale * b_lin.
    y_ref  : (1, tt2, odim)    f32
    se/so/ss_ref : (tt2+1, 2, G, odim) bf16 VMEM scratch.  conv1 output staged
        with conv2's freq taps pre-grouped (kw = 0 / 1 / 2) and the time rows
        pair-split: [i, p] holds conv1 row 2*i + p.  Every conv2 matmul operand
        is then a full, 8-aligned block read (no per-tap relayouts).
    """
    odim = w2_ref.shape[-1]
    twoG = 2 * G

    w1 = w1_ref[...]                              # (9, odim) bf16
    b1 = b1_ref[...]                              # (1, odim) f32

    # ----- conv1 (1 -> odim, 3x3, stride 2) + ReLU: one K=9 MXU matmul -----
    def conv1(xtile):                             # (R, 2G, 9) f32
        rows = xtile.shape[0]
        lhs = xtile.reshape(rows * twoG, 9).astype(jnp.bfloat16)   # free fold (2G % 8 == 0)
        h = jnp.dot(lhs, w1, preferred_element_type=jnp.float32)
        h = jnp.maximum(h + b1, 0.0)
        return h.astype(jnp.bfloat16).reshape(rows, twoG, odim)

    h_main = conv1(xm_ref[0])                     # (2*tt2, 2G, odim) bf16
    # Stage by conv2 kw tap: even (f1=2*f2), odd (f1=2*f2+1), shifted-even
    # (f1=2*f2+2).  The leading-dim pair split (i, p) <- row 2*i + p is free.
    se_ref[pl.ds(0, tt2), :, :, :] = h_main[:, 0:G, :].reshape(tt2, 2, G, odim)
    so_ref[pl.ds(0, tt2), :, :, :] = h_main[:, G:twoG, :].reshape(tt2, 2, G, odim)
    ss_ref[pl.ds(0, tt2), :, :, :] = h_main[:, 1:G + 1, :].reshape(tt2, 2, G, odim)

    h_halo = conv1(xh_ref[0])                     # (1, 2G, odim) bf16
    se_ref[tt2, 0, :, :] = h_halo[0, 0:G, :]
    so_ref[tt2, 0, :, :] = h_halo[0, G:twoG, :]
    ss_ref[tt2, 0, :, :] = h_halo[0, 1:G + 1, :]
    # NOTE: scratch row (tt2, 1) is never written and never read.

    # ----- conv2 (odim -> odim, 3x3, stride 2) + ReLU: 9 MXU matmuls -----
    grp = (se_ref, so_ref, ss_ref)                # kw = 0, 1, 2
    acc = None
    for kh in range(3):
        r0, p = (0, kh) if kh < 2 else (1, 0)     # conv1 rows 2i / 2i+1 / 2i+2
        for kw in range(3):
            lhs = grp[kw][pl.ds(r0, tt2), p, :, :]          # (tt2, G, odim) bf16
            lhs = lhs.reshape(tt2 * G, odim)                # free fold (G % 8 == 0)
            term = jnp.dot(lhs, w2_ref[3 * kh + kw],
                           preferred_element_type=jnp.float32)
            acc = term if acc is None else acc + term       # init from first matmul
    h2 = jnp.maximum(acc + b2_ref[...], 0.0).astype(jnp.bfloat16)
    h2 = h2.reshape(tt2, G, odim)                           # free split

    # ----- Linear(odim*F2 -> odim); xscale folded into wl, bias into pe -----
    y = None
    for f2 in range(F2):                          # padded freq columns f2 >= F2 skipped
        term = jnp.dot(h2[:, f2, :], wl_ref[f2],
                       preferred_element_type=jnp.float32)
        y = term if y is None else y + term
    # Output lane width == odim (lane-dense for production odim >= 128).
    # TODO(synk): emit bf16 here if the downstream encoder consumes bf16.
    y_ref[0] = (y + pe_ref[...]).astype(y_ref.dtype)


# ------------------------------ pallas wrapper ------------------------------ #

def _fused_pallas(xp, w1v, b1, w2r, b2, wl3, pe, T1, T2, F2, G, odim,
                  *, time_tile):
    B = xp.shape[0]
    tt2 = min(T2, max(1, time_tile))
    if tt2 < T2:
        tt2 = max(8, (tt2 // 8) * 8)              # partial tiles need 8-aligned rows
    n_t = pl.cdiv(T2, tt2)

    kernel = functools.partial(_fused_subsample_kernel, tt2=tt2, F2=F2, G=G)

    def main_map(b, t):
        # Partial last tile: the out-of-range part of this block holds garbage
        # that only flows into output rows Pallas masks on store (correct; see
        # review's correctness note).
        return (b, t, 0, 0)

    def halo_map(b, t):
        # conv1 row 2*tt2*(t+1).  The clamp only triggers on a partial last
        # tile, where the (wrong) halo row feeds output rows masked on store.
        return (b, jnp.minimum(2 * tt2 * (t + 1), T1 - 1), 0, 0)

    # Grid-invariant weights: single-buffer them once they are big enough to
    # matter (saves ~half their VMEM at odim=512 on v7x; zero perf cost since
    # they are fetched once).  Gated so toy shapes use the plain default spec.
    big = odim >= 256

    def const_spec(shape):
        n = len(shape)

        def imap(b, t):
            return (0,) * n

        if big:
            return pl.BlockSpec(shape, imap, pipeline_mode=pl.Buffered(1))
        return pl.BlockSpec(shape, imap)

    cp = dict(dimension_semantics=("parallel", "parallel"))
    if big:
        # v5e's default scoped VMEM is 16 MiB; be explicit at production size.
        # (On v7x at odim=512, also drop time_tile to 32-64.)
        cp["vmem_limit_bytes"] = 64 * 1024 * 1024

    return pl.pallas_call(
        kernel,
        out_shape=jax.ShapeDtypeStruct((B, T2, odim), jnp.float32),
        grid=(B, n_t),
        in_specs=[
            pl.BlockSpec((1, 2 * tt2, 2 * G, 9), main_map),
            pl.BlockSpec((1, 1, 2 * G, 9), halo_map),
            pl.BlockSpec((9, odim), lambda b, t: (0, 0)),
            pl.BlockSpec((1, odim), lambda b, t: (0, 0)),
            const_spec((9, odim, odim)),
            pl.BlockSpec((1, odim), lambda b, t: (0, 0)),
            const_spec((F2, odim, odim)),
            pl.BlockSpec((tt2, odim), lambda b, t: (t, 0)),
        ],
        out_specs=pl.BlockSpec((1, tt2, odim), lambda b, t: (b, t, 0)),
        scratch_shapes=[pltpu.VMEM((tt2 + 1, 2, G, odim), jnp.bfloat16)
                        for _ in range(3)],
        compiler_params=pltpu.CompilerParams(**cp),
    )(xp, xp, w1v, b1, w2r, b2, wl3, pe)


# ------------------------------- glue (JAX) --------------------------------- #

def _build_conv1_patches(x, T1, F2, G):
    """(B, T, idim) -> (B, T1, 2G, 9) conv1 tap patches from the SMALL raw input.

    Tap index k = 3*kh + kw sits on the LAST axis (review item 3).  The freq
    axis holds the conv1 output columns conv2 consumes, grouped
    [even f1 = 0,2,..,2*F2 | odd f1 = 1,3,..,2*F2-1], each group zero-padded to
    G (a multiple of 8) so every in-kernel reshape is a free, aligned fold.
    (The trailing 9 lane-pads in HBM, but per tile this is still 2-4x less
    traffic than the conv1-output round trip it replaces at odim >= 256.)
    """
    taps = []
    for kh in range(3):
        rows = x[:, kh:kh + 2 * T1 - 1:2, :]                       # (B, T1, idim)
        for kw in range(3):
            even = rows[:, :, kw:kw + 4 * F2 + 1:4]                # f1 = 2g   (F2+1)
            odd = rows[:, :, kw + 2:kw + 2 + 4 * (F2 - 1) + 1:4]   # f1 = 2g+1 (F2)
            even = jnp.pad(even, ((0, 0), (0, 0), (0, G - (F2 + 1))))
            odd = jnp.pad(odd, ((0, 0), (0, 0), (0, G - F2)))
            taps.append(jnp.concatenate([even, odd], axis=-1))     # (B, T1, 2G)
    return jnp.stack(taps, axis=-1)                                # (B, T1, 2G, 9)


def make_positional_encoding(length, d_model):
    """Standard ESPnet sinusoidal positional encoding, shape (length, d_model)."""
    pos = jnp.arange(length, dtype=jnp.float32)[:, None]
    div = jnp.exp(jnp.arange(0, d_model, 2, dtype=jnp.float32)
                  * -(math.log(10000.0) / d_model))
    pe = jnp.zeros((length, d_model), dtype=jnp.float32)
    pe = pe.at[:, 0::2].set(jnp.sin(pos * div))
    pe = pe.at[:, 1::2].set(jnp.cos(pos * div)[:, : d_model // 2])
    return pe


def conv2d_subsampling_forward(x, x_mask, params, *, time_tile=DEFAULT_TIME_TILE):
    """Forward pass matching the PyTorch Conv2dSubsampling module.

    x: (B, T, idim) float32, x_mask: (B, 1, T) bool or None.
    Returns (y, mask') with y: (B, T', odim), T' = ((T-1)//2 - 1)//2.
    """
    w1, b1, w2, b2, w_lin, b_lin = (params["w1"], params["b1"], params["w2"],
                                    params["b2"], params["w_lin"], params["b_lin"])
    odim = w1.shape[0]
    B, T, idim = x.shape
    T1 = (T - 3) // 2 + 1
    F1 = (idim - 3) // 2 + 1
    T2 = (T1 - 3) // 2 + 1
    F2 = (F1 - 3) // 2 + 1
    G = _round_up(F2 + 1, 8)                     # padded conv2 freq-group width
    xscale = math.sqrt(float(odim))

    # ---- trace-time prep on SMALL tensors only (raw input + weights) ----
    xp = _build_conv1_patches(x.astype(jnp.float32), T1, F2, G)    # (B, T1, 2G, 9)
    w1v = jnp.transpose(w1[:, 0], (1, 2, 0)).reshape(9, odim).astype(jnp.bfloat16)
    w2r = jnp.transpose(w2, (2, 3, 1, 0)).reshape(9, odim, odim).astype(jnp.bfloat16)
    # Permute the (small) linear weight so h2 stays in its natural (t2, f2, c)
    # layout; fold xscale into it and xscale*b_lin into the PE tile so the
    # kernel epilogue is a single add.
    wl3 = (jnp.transpose(w_lin.reshape(odim, odim, F2), (2, 1, 0)) * xscale
           ).astype(jnp.bfloat16)                                  # (F2, cin, dout)
    pe = make_positional_encoding(T2, odim) + xscale * b_lin[None, :]

    y = _fused_pallas(xp, w1v, b1.reshape(1, odim), w2r, b2.reshape(1, odim),
                      wl3, pe, T1, T2, F2, G, odim, time_tile=time_tile)

    # TODO(synk): dropout is identity (eval mode); no stochastic op emitted.
    if x_mask is None:
        return y, None
    return y, x_mask[:, :, :-2:2][:, :, :-2:2]


# -------------------------------- reference --------------------------------- #

def conv2d_subsampling_reference(x, x_mask, params):
    """Pure-JAX f32 reference mirroring the PyTorch forward (NCHW convs)."""
    w1, b1, w2, b2, w_lin, b_lin = (params["w1"], params["b1"], params["w2"],
                                    params["b2"], params["w_lin"], params["b_lin"])
    odim = w1.shape[0]
    xn = x[:, None, :, :]
    dn = ("NCHW", "OIHW", "NCHW")
    h = jax.lax.conv_general_dilated(xn, w1, (2, 2), "VALID", dimension_numbers=dn)
    h = jax.nn.relu(h + b1[None, :, None, None])
    h = jax.lax.conv_general_dilated(h, w2, (2, 2), "VALID", dimension_numbers=dn)
    h = jax.nn.relu(h + b2[None, :, None, None])
    B, C, T2, F2 = h.shape
    h = jnp.transpose(h, (0, 2, 1, 3)).reshape(B, T2, C * F2)
    y = h @ w_lin.T + b_lin
    y = y * math.sqrt(float(odim)) + make_positional_encoding(T2, odim)[None]
    if x_mask is None:
        return y, None
    return y, x_mask[:, :, :-2:2][:, :, :-2:2]


# ---------------------------------- main ------------------------------------ #

if __name__ == "__main__":
    B, T, idim, odim = 2, 16, 16, 32
    F2 = ((idim - 1) // 2 - 1) // 2          # = 3
    lin_in = odim * F2                       # = 96

    key = jax.random.PRNGKey(0)
    k = jax.random.split(key, 8)
    params = {
        "w1": 0.1 * jax.random.normal(k[0], (odim, 1, 3, 3), jnp.float32),
        "b1": 0.1 * jax.random.normal(k[1], (odim,), jnp.float32),
        "w2": 0.05 * jax.random.normal(k[2], (odim, odim, 3, 3), jnp.float32),
        "b2": 0.1 * jax.random.normal(k[3], (odim,), jnp.float32),
        "w_lin": 0.05 * jax.random.normal(k[4], (odim, lin_in), jnp.float32),
        "b_lin": 0.1 * jax.random.normal(k[5], (odim,), jnp.float32),
    }
    x = jax.random.normal(k[6], (B, T, idim), jnp.float32)
    x_mask = jnp.ones((B, 1, T), dtype=bool)

    y, m = conv2d_subsampling_forward(x, x_mask, params)
    y = jax.block_until_ready(y)
    m = jax.block_until_ready(m)

    y_ref, m_ref = conv2d_subsampling_reference(x, x_mask, params)
    T2 = ((T - 1) // 2 - 1) // 2
    assert y.shape == (B, T2, odim), y.shape
    assert m.shape == m_ref.shape and bool(jnp.all(m == m_ref))
    err = float(jnp.max(jnp.abs(y - y_ref)))
    # bf16 MXU operands / staged intermediates -> relaxed tolerance.
    assert jnp.allclose(y, y_ref, rtol=5e-2, atol=5e-2), err

    print("KERNEL_OK")
</pallas_src>

<mosaic_0001>
module attributes {stable_mosaic.version = 11 : i64} {
  func.func @_fused_subsample_kernel(%arg0: i32, %arg1: i32, %arg2: memref<1x6x16x9xf32, #tpu.memory_space<vmem>>, %arg3: memref<1x1x16x9xf32, #tpu.memory_space<vmem>>, %arg4: memref<9x32xbf16, #tpu.memory_space<vmem>>, %arg5: memref<1x32xf32, #tpu.memory_space<vmem>>, %arg6: memref<9x32x32xbf16, #tpu.memory_space<vmem>>, %arg7: memref<1x32xf32, #tpu.memory_space<vmem>>, %arg8: memref<3x32x32xbf16, #tpu.memory_space<vmem>>, %arg9: memref<3x32xf32, #tpu.memory_space<vmem>>, %arg10: memref<1x3x32xf32, #tpu.memory_space<vmem>>, %arg11: memref<4x2x8x32xbf16, #tpu.memory_space<vmem>>, %arg12: memref<4x2x8x32xbf16, #tpu.memory_space<vmem>>, %arg13: memref<4x2x8x32xbf16, #tpu.memory_space<vmem>>) attributes {dimension_semantics = [#tpu.dimension_semantics<parallel>, #tpu.dimension_semantics<parallel>], iteration_bounds = array<i64: 2, 1>, scalar_prefetch = 0 : i64, scratch_operands = 3 : i64, tpu.core_type = #tpu.core_type<tc>, window_params = [{transform_indices = @transform_0, window_bounds = array<i64: 1, 6, 16, 9>}, {transform_indices = @transform_1, window_bounds = array<i64: 1, 1, 16, 9>}, {pipeline_mode = #tpu.pipeline_mode<synchronous>, transform_indices = @transform_2, window_bounds = array<i64: 9, 32>}, {pipeline_mode = #tpu.pipeline_mode<synchronous>, transform_indices = @transform_3, window_bounds = array<i64: 1, 32>}, {pipeline_mode = #tpu.pipeline_mode<synchronous>, transform_indices = @transform_4, window_bounds = array<i64: 9, 32, 32>}, {pipeline_mode = #tpu.pipeline_mode<synchronous>, transform_indices = @transform_5, window_bounds = array<i64: 1, 32>}, {pipeline_mode = #tpu.pipeline_mode<synchronous>, transform_indices = @transform_6, window_bounds = array<i64: 3, 32, 32>}, {transform_indices = @transform_7, window_bounds = array<i64: 3, 32>}, {transform_indices = @transform_8, window_bounds = array<i64: 1, 3, 32>}]} {
    %c0 = arith.constant 0 : index
    %c0_0 = arith.constant 0 : index
    %0 = vector.load %arg4[%c0, %c0_0] : memref<9x32xbf16, #tpu.memory_space<vmem>>, vector<9x32xbf16>
    %c0_1 = arith.constant 0 : index
    %c0_2 = arith.constant 0 : index
    %1 = vector.load %arg5[%c0_1, %c0_2] : memref<1x32xf32, #tpu.memory_space<vmem>>, vector<1x32xf32>
    %c0_3 = arith.constant 0 : index
    %c0_4 = arith.constant 0 : index
    %c0_5 = arith.constant 0 : index
    %c0_6 = arith.constant 0 : index
    %2 = vector.load %arg2[%c0_3, %c0_4, %c0_5, %c0_6] : memref<1x6x16x9xf32, #tpu.memory_space<vmem>>, vector<1x6x16x9xf32>
    %3 = vector.shape_cast %2 : vector<1x6x16x9xf32> to vector<6x16x9xf32>
    %4 = vector.shape_cast %3 : vector<6x16x9xf32> to vector<96x9xf32>
    %5 = arith.truncf %4 : vector<96x9xf32> to vector<96x9xbf16>
    %cst = arith.constant dense<0.000000e+00> : vector<96x32xf32>
    %6 = tpu.matmul %5, %0, %cst {dimension_numbers = #tpu.dot_dimension_numbers<[1], [0], [0], [1], [0, 0, 1, 1], [], []>} : vector<96x9xbf16>, vector<9x32xbf16>, vector<96x32xf32> -> vector<96x32xf32>
    %7 = vector.broadcast %1 : vector<1x32xf32> to vector<96x32xf32>
    %8 = arith.addf %6, %7 : vector<96x32xf32>
    %cst_7 = arith.constant 0.000000e+00 : f32
    %9 = vector.broadcast %cst_7 : f32 to vector<96x32xf32>
    %10 = arith.maximumf %8, %9 : vector<96x32xf32>
    %11 = arith.truncf %10 : vector<96x32xf32> to vector<96x32xbf16>
    %12 = vector.shape_cast %11 : vector<96x32xbf16> to vector<6x16x32xbf16>
    %13 = vector.extract_strided_slice %12 {offsets = [0, 0, 0], sizes = [6, 8, 32], strides = [1, 1, 1]} : vector<6x16x32xbf16> to vector<6x8x32xbf16>
    %14 = vector.shape_cast %13 : vector<6x8x32xbf16> to vector<3x2x8x32xbf16>
    %c0_8 = arith.constant 0 : index
    %c0_9 = arith.constant 0 : index
    %c0_10 = arith.constant 0 : index
    %c0_11 = arith.constant 0 : index
    %15 = vector.load %arg11[%c0_8, %c0_9, %c0_10, %c0_11] : memref<4x2x8x32xbf16, #tpu.memory_space<vmem>>, vector<3x2x8x32xbf16>
    tpu.vector_store %arg11[%c0_8, %c0_9, %c0_10, %c0_11], %14 {strides = array<i32>} : memref<4x2x8x32xbf16, #tpu.memory_space<vmem>>, vector<3x2x8x32xbf16>,
    %16 = vector.extract_strided_slice %12 {offsets = [0, 8, 0], sizes = [6, 8, 32], strides = [1, 1, 1]} : vector<6x16x32xbf16> to vector<6x8x32xbf16>
    %17 = vector.shape_cast %16 : vector<6x8x32xbf16> to vector<3x2x8x32xbf16>
    %c0_12 = arith.constant 0 : index
    %c0_13 = arith.constant 0 : index
    %c0_14 = arith.constant 0 : index
    %c0_15 = arith.constant 0 : index
    %18 = vector.load %arg12[%c0_12, %c0_13, %c0_14, %c0_15] : memref<4x2x8x32xbf16, #tpu.memory_space<vmem>>, vector<3x2x8x32xbf16>
    tpu.vector_store %arg12[%c0_12, %c0_13, %c0_14, %c0_15], %17 {strides = array<i32>} : memref<4x2x8x32xbf16, #tpu.memory_space<vmem>>, vector<3x2x8x32xbf16>,
    %19 = vector.extract_strided_slice %12 {offsets = [0, 1, 0], sizes = [6, 8, 32], strides = [1, 1, 1]} : vector<6x16x32xbf16> to vector<6x8x32xbf16>
    %20 = vector.shape_cast %19 : vector<6x8x32xbf16> to vector<3x2x8x32xbf16>
    %c0_16 = arith.constant 0 : index
    %c0_17 = arith.constant 0 : index
    %c0_18 = arith.constant 0 : index
    %c0_19 = arith.constant 0 : index
    %21 = vector.load %arg13[%c0_16, %c0_17, %c0_18, %c0_19] : memref<4x2x8x32xbf16, #tpu.memory_space<vmem>>, vector<3x2x8x32xbf16>
    tpu.vector_store %arg13[%c0_16, %c0_17, %c0_18, %c0_19], %20 {strides = array<i32>} : memref<4x2x8x32xbf16, #tpu.memory_space<vmem>>, vector<3x2x8x32xbf16>,
    %c0_20 = arith.constant 0 : index
    %c0_21 = arith.constant 0 : index
    %c0_22 = arith.constant 0 : index
    %c0_23 = arith.constant 0 : index
    %22 = vector.load %arg3[%c0_20, %c0_21, %c0_22, %c0_23] : memref<1x1x16x9xf32, #tpu.memory_space<vmem>>, vector<1x1x16x9xf32>
    %23 = vector.shape_cast %22 : vector<1x1x16x9xf32> to vector<1x16x9xf32>
    %24 = vector.shape_cast %23 : vector<1x16x9xf32> to vector<16x9xf32>
    %25 = arith.truncf %24 : vector<16x9xf32> to vector<16x9xbf16>
    %cst_24 = arith.constant dense<0.000000e+00> : vector<16x32xf32>
    %26 = tpu.matmul %25, %0, %cst_24 {dimension_numbers = #tpu.dot_dimension_numbers<[1], [0], [0], [1], [0, 0, 1, 1], [], []>} : vector<16x9xbf16>, vector<9x32xbf16>, vector<16x32xf32> -> vector<16x32xf32>
    %27 = vector.broadcast %1 : vector<1x32xf32> to vector<16x32xf32>
    %28 = arith.addf %26, %27 : vector<16x32xf32>
    %cst_25 = arith.constant 0.000000e+00 : f32
    %29 = vector.broadcast %cst_25 : f32 to vector<16x32xf32>
    %30 = arith.maximumf %28, %29 : vector<16x32xf32>
    %31 = arith.truncf %30 : vector<16x32xf32> to vector<16x32xbf16>
    %32 = vector.shape_cast %31 : vector<16x32xbf16> to vector<1x16x32xbf16>
    %33 = vector.extract_strided_slice %32 {offsets = [0, 0, 0], sizes = [1, 8, 32], strides = [1, 1, 1]} : vector<1x16x32xbf16> to vector<1x8x32xbf16>
    %34 = vector.shape_cast %33 : vector<1x8x32xbf16> to vector<8x32xbf16>
    %c3 = arith.constant 3 : index
    %c0_26 = arith.constant 0 : index
    %c0_27 = arith.constant 0 : index
    %c0_28 = arith.constant 0 : index
    %35 = vector.load %arg11[%c3, %c0_26, %c0_27, %c0_28] : memref<4x2x8x32xbf16, #tpu.memory_space<vmem>>, vector<1x1x8x32xbf16>
    %36 = vector.shape_cast %35 : vector<1x1x8x32xbf16> to vector<8x32xbf16>
    %37 = vector.shape_cast %34 : vector<8x32xbf16> to vector<1x1x8x32xbf16>
    tpu.vector_store %arg11[%c3, %c0_26, %c0_27, %c0_28], %37 {strides = array<i32>} : memref<4x2x8x32xbf16, #tpu.memory_space<vmem>>, vector<1x1x8x32xbf16>,
    %38 = vector.extract_strided_slice %32 {offsets = [0, 8, 0], sizes = [1, 8, 32], strides = [1, 1, 1]} : vector<1x16x32xbf16> to vector<1x8x32xbf16>
    %39 = vector.shape_cast %38 : vector<1x8x32xbf16> to vector<8x32xbf16>
    %c3_29 = arith.constant 3 : index
    %c0_30 = arith.constant 0 : index
    %c0_31 = arith.constant 0 : index
    %c0_32 = arith.constant 0 : index
    %40 = vector.load %arg12[%c3_29, %c0_30, %c0_31, %c0_32] : memref<4x2x8x32xbf16, #tpu.memory_space<vmem>>, vector<1x1x8x32xbf16>
    %41 = vector.shape_cast %40 : vector<1x1x8x32xbf16> to vector<8x32xbf16>
    %42 = vector.shape_cast %39 : vector<8x32xbf16> to vector<1x1x8x32xbf16>
    tpu.vector_store %arg12[%c3_29, %c0_30, %c0_31, %c0_32], %42 {strides = array<i32>} : memref<4x2x8x32xbf16, #tpu.memory_space<vmem>>, vector<1x1x8x32xbf16>,
    %43 = vector.extract_strided_slice %32 {offsets = [0, 1, 0], sizes = [1, 8, 32], strides = [1, 1, 1]} : vector<1x16x32xbf16> to vector<1x8x32xbf16>
    %44 = vector.shape_cast %43 : vector<1x8x32xbf16> to vector<8x32xbf16>
    %c3_33 = arith.constant 3 : index
    %c0_34 = arith.constant 0 : index
    %c0_35 = arith.constant 0 : index
    %c0_36 = arith.constant 0 : index
    %45 = vector.load %arg13[%c3_33, %c0_34, %c0_35, %c0_36] : memref<4x2x8x32xbf16, #tpu.memory_space<vmem>>, vector<1x1x8x32xbf16>
    %46 = vector.shape_cast %45 : vector<1x1x8x32xbf16> to vector<8x32xbf16>
    %47 = vector.shape_cast %44 : vector<8x32xbf16> to vector<1x1x8x32xbf16>
    tpu.vector_store %arg13[%c3_33, %c0_34, %c0_35, %c0_36], %47 {strides = array<i32>} : memref<4x2x8x32xbf16, #tpu.memory_space<vmem>>, vector<1x1x8x32xbf16>,
    %c0_37 = arith.constant 0 : index
    %c0_38 = arith.constant 0 : index
    %c0_39 = arith.constant 0 : index
    %c0_40 = arith.constant 0 : index
    %48 = vector.load %arg11[%c0_37, %c0_38, %c0_39, %c0_40] : memref<4x2x8x32xbf16, #tpu.memory_space<vmem>>, vector<3x1x8x32xbf16>
    %49 = vector.shape_cast %48 : vector<3x1x8x32xbf16> to vector<3x8x32xbf16>
    %50 = vector.shape_cast %49 : vector<3x8x32xbf16> to vector<24x32xbf16>
    %c0_41 = arith.constant 0 : index
    %c0_42 = arith.constant 0 : index
    %c0_43 = arith.constant 0 : index
    %51 = vector.load %arg6[%c0_41, %c0_42, %c0_43] : memref<9x32x32xbf16, #tpu.memory_space<vmem>>, vector<1x32x32xbf16>
    %52 = vector.shape_cast %51 : vector<1x32x32xbf16> to vector<32x32xbf16>
    %cst_44 = arith.constant dense<0.000000e+00> : vector<24x32xf32>
    %53 = tpu.matmul %50, %52, %cst_44 {dimension_numbers = #tpu.dot_dimension_numbers<[1], [0], [0], [1], [0, 0, 1, 1], [], []>} : vector<24x32xbf16>, vector<32x32xbf16>, vector<24x32xf32> -> vector<24x32xf32>
    %c0_45 = arith.constant 0 : index
    %c0_46 = arith.constant 0 : index
    %c0_47 = arith.constant 0 : index
    %c0_48 = arith.constant 0 : index
    %54 = vector.load %arg12[%c0_45, %c0_46, %c0_47, %c0_48] : memref<4x2x8x32xbf16, #tpu.memory_space<vmem>>, vector<3x1x8x32xbf16>
    %55 = vector.shape_cast %54 : vector<3x1x8x32xbf16> to vector<3x8x32xbf16>
    %56 = vector.shape_cast %55 : vector<3x8x32xbf16> to vector<24x32xbf16>
    %c1 = arith.constant 1 : index
    %c0_49 = arith.constant 0 : index
    %c0_50 = arith.constant 0 : index
    %57 = vector.load %arg6[%c1, %c0_49, %c0_50] : memref<9x32x32xbf16, #tpu.memory_space<vmem>>, vector<1x32x32xbf16>
    %58 = vector.shape_cast %57 : vector<1x32x32xbf16> to vector<32x32xbf16>
    %cst_51 = arith.constant dense<0.000000e+00> : vector<24x32xf32>
    %59 = tpu.matmul %56, %58, %cst_51 {dimension_numbers = #tpu.dot_dimension_numbers<[1], [0], [0], [1], [0, 0, 1, 1], [], []>} : vector<24x32xbf16>, vector<32x32xbf16>, vector<24x32xf32> -> vector<24x32xf32>
    %60 = arith.addf %53, %59 : vector<24x32xf32>
    %c0_52 = arith.constant 0 : index
    %c0_53 = arith.constant 0 : index
    %c0_54 = arith.constant 0 : index
    %c0_55 = arith.constant 0 : index
    %61 = vector.load %arg13[%c0_52, %c0_53, %c0_54, %c0_55] : memref<4x2x8x32xbf16, #tpu.memory_space<vmem>>, vector<3x1x8x32xbf16>
    %62 = vector.shape_cast %61 : vector<3x1x8x32xbf16> to vector<3x8x32xbf16>
    %63 = vector.shape_cast %62 : vector<3x8x32xbf16> to vector<24x32xbf16>
    %c2 = arith.constant 2 : index
    %c0_56 = arith.constant 0 : index
    %c0_57 = arith.constant 0 : index
    %64 = vector.load %arg6[%c2, %c0_56, %c0_57] : memref<9x32x32xbf16, #tpu.memory_space<vmem>>, vector<1x32x32xbf16>
    %65 = vector.shape_cast %64 : vector<1x32x32xbf16> to vector<32x32xbf16>
    %cst_58 = arith.constant dense<0.000000e+00> : vector<24x32xf32>
    %66 = tpu.matmul %63, %65, %cst_58 {dimension_numbers = #tpu.dot_dimension_numbers<[1], [0], [0], [1], [0, 0, 1, 1], [], []>} : vector<24x32xbf16>, vector<32x32xbf16>, vector<24x32xf32> -> vector<24x32xf32>
    %67 = arith.addf %60, %66 : vector<24x32xf32>
    %c0_59 = arith.constant 0 : index
    %c1_60 = arith.constant 1 : index
    %c0_61 = arith.constant 0 : index
    %c0_62 = arith.constant 0 : index
    %68 = vector.load %arg11[%c0_59, %c1_60, %c0_61, %c0_62] : memref<4x2x8x32xbf16, #tpu.memory_space<vmem>>, vector<3x1x8x32xbf16>
    %69 = vector.shape_cast %68 : vector<3x1x8x32xbf16> to vector<3x8x32xbf16>
    %70 = vector.shape_cast %69 : vector<3x8x32xbf16> to vector<24x32xbf16>
    %c3_63 = arith.constant 3 : index
    %c0_64 = arith.constant 0 : index
    %c0_65 = arith.constant 0 : index
    %71 = vector.load %arg6[%c3_63, %c0_64, %c0_65] : memref<9x32x32xbf16, #tpu.memory_space<vmem>>, vector<1x32x32xbf16>
    %72 = vector.shape_cast %71 : vector<1x32x32xbf16> to vector<32x32xbf16>
    %cst_66 = arith.constant dense<0.000000e+00> : vector<24x32xf32>
    %73 = tpu.matmul %70, %72, %cst_66 {dimension_numbers = #tpu.dot_dimension_numbers<[1], [0], [0], [1], [0, 0, 1, 1], [], []>} : vector<24x32xbf16>, vector<32x32xbf16>, vector<24x32xf32> -> vector<24x32xf32>
    %74 = arith.addf %67, %73 : vector<24x32xf32>
    %c0_67 = arith.constant 0 : index
    %c1_68 = arith.constant 1 : index
    %c0_69 = arith.constant 0 : index
    %c0_70 = arith.constant 0 : index
    %75 = vector.load %arg12[%c0_67, %c1_68, %c0_69, %c0_70] : memref<4x2x8x32xbf16, #tpu.memory_space<vmem>>, vector<3x1x8x32xbf16>
    %76 = vector.shape_cast %75 : vector<3x1x8x32xbf16> to vector<3x8x32xbf16>
    %77 = vector.shape_cast %76 : vector<3x8x32xbf16> to vector<24x32xbf16>
    %c4 = arith.constant 4 : index
    %c0_71 = arith.constant 0 : index
    %c0_72 = arith.constant 0 : index
    %78 = vector.load %arg6[%c4, %c0_71, %c0_72] : memref<9x32x32xbf16, #tpu.memory_space<vmem>>, vector<1x32x32xbf16>
    %79 = vector.shape_cast %78 : vector<1x32x32xbf16> to vector<32x32xbf16>
    %cst_73 = arith.constant dense<0.000000e+00> : vector<24x32xf32>
    %80 = tpu.matmul %77, %79, %cst_73 {dimension_numbers = #tpu.dot_dimension_numbers<[1], [0], [0], [1], [0, 0, 1, 1], [], []>} : vector<24x32xbf16>, vector<32x32xbf16>, vector<24x32xf32> -> vector<24x32xf32>
    %81 = arith.addf %74, %80 : vector<24x32xf32>
    %c0_74 = arith.constant 0 : index
    %c1_75 = arith.constant 1 : index
    %c0_76 = arith.constant 0 : index
    %c0_77 = arith.constant 0 : index
    %82 = vector.load %arg13[%c0_74, %c1_75, %c0_76, %c0_77] : memref<4x2x8x32xbf16, #tpu.memory_space<vmem>>, vector<3x1x8x32xbf16>
    %83 = vector.shape_cast %82 : vector<3x1x8x32xbf16> to vector<3x8x32xbf16>
    %84 = vector.shape_cast %83 : vector<3x8x32xbf16> to vector<24x32xbf16>
    %c5 = arith.constant 5 : index
    %c0_78 = arith.constant 0 : index
    %c0_79 = arith.constant 0 : index
    %85 = vector.load %arg6[%c5, %c0_78, %c0_79] : memref<9x32x32xbf16, #tpu.memory_space<vmem>>, vector<1x32x32xbf16>
    %86 = vector.shape_cast %85 : vector<1x32x32xbf16> to vector<32x32xbf16>
    %cst_80 = arith.constant dense<0.000000e+00> : vector<24x32xf32>
    %87 = tpu.matmul %84, %86, %cst_80 {dimension_numbers = #tpu.dot_dimension_numbers<[1], [0], [0], [1], [0, 0, 1, 1], [], []>} : vector<24x32xbf16>, vector<32x32xbf16>, vector<24x32xf32> -> vector<24x32xf32>
    %88 = arith.addf %81, %87 : vector<24x32xf32>
    %c1_81 = arith.constant 1 : index
    %c0_82 = arith.constant 0 : index
    %c0_83 = arith.constant 0 : index
    %c0_84 = arith.constant 0 : index
    %89 = vector.load %arg11[%c1_81, %c0_82, %c0_83, %c0_84] : memref<4x2x8x32xbf16, #tpu.memory_space<vmem>>, vector<3x1x8x32xbf16>
    %90 = vector.shape_cast %89 : vector<3x1x8x32xbf16> to vector<3x8x32xbf16>
    %91 = vector.shape_cast %90 : vector<3x8x32xbf16> to vector<24x32xbf16>
    %c6 = arith.constant 6 : index
    %c0_85 = arith.constant 0 : index
    %c0_86 = arith.constant 0 : index
    %92 = vector.load %arg6[%c6, %c0_85, %c0_86] : memref<9x32x32xbf16, #tpu.memory_space<vmem>>, vector<1x32x32xbf16>
    %93 = vector.shape_cast %92 : vector<1x32x32xbf16> to vector<32x32xbf16>
    %cst_87 = arith.constant dense<0.000000e+00> : vector<24x32xf32>
    %94 = tpu.matmul %91, %93, %cst_87 {dimension_numbers = #tpu.dot_dimension_numbers<[1], [0], [0], [1], [0, 0, 1, 1], [], []>} : vector<24x32xbf16>, vector<32x32xbf16>, vector<24x32xf32> -> vector<24x32xf32>
    %95 = arith.addf %88, %94 : vector<24x32xf32>
    %c1_88 = arith.constant 1 : index
    %c0_89 = arith.constant 0 : index
    %c0_90 = arith.constant 0 : index
    %c0_91 = arith.constant 0 : index
    %96 = vector.load %arg12[%c1_88, %c0_89, %c0_90, %c0_91] : memref<4x2x8x32xbf16, #tpu.memory_space<vmem>>, vector<3x1x8x32xbf16>
    %97 = vector.shape_cast %96 : vector<3x1x8x32xbf16> to vector<3x8x32xbf16>
    %98 = vector.shape_cast %97 : vector<3x8x32xbf16> to vector<24x32xbf16>
    %c7 = arith.constant 7 : index
    %c0_92 = arith.constant 0 : index
    %c0_93 = arith.constant 0 : index
    %99 = vector.load %arg6[%c7, %c0_92, %c0_93] : memref<9x32x32xbf16, #tpu.memory_space<vmem>>, vector<1x32x32xbf16>
    %100 = vector.shape_cast %99 : vector<1x32x32xbf16> to vector<32x32xbf16>
    %cst_94 = arith.constant dense<0.000000e+00> : vector<24x32xf32>
    %101 = tpu.matmul %98, %100, %cst_94 {dimension_numbers = #tpu.dot_dimension_numbers<[1], [0], [0], [1], [0, 0, 1, 1], [], []>} : vector<24x32xbf16>, vector<32x32xbf16>, vector<24x32xf32> -> vector<24x32xf32>
    %102 = arith.addf %95, %101 : vector<24x32xf32>
    %c1_95 = arith.constant 1 : index
    %c0_96 = arith.constant 0 : index
    %c0_97 = arith.constant 0 : index
    %c0_98 = arith.constant 0 : index
    %103 = vector.load %arg13[%c1_95, %c0_96, %c0_97, %c0_98] : memref<4x2x8x32xbf16, #tpu.memory_space<vmem>>, vector<3x1x8x32xbf16>
    %104 = vector.shape_cast %103 : vector<3x1x8x32xbf16> to vector<3x8x32xbf16>
    %105 = vector.shape_cast %104 : vector<3x8x32xbf16> to vector<24x32xbf16>
    %c8 = arith.constant 8 : index
    %c0_99 = arith.constant 0 : index
    %c0_100 = arith.constant 0 : index
    %106 = vector.load %arg6[%c8, %c0_99, %c0_100] : memref<9x32x32xbf16, #tpu.memory_space<vmem>>, vector<1x32x32xbf16>
    %107 = vector.shape_cast %106 : vector<1x32x32xbf16> to vector<32x32xbf16>
    %cst_101 = arith.constant dense<0.000000e+00> : vector<24x32xf32>
    %108 = tpu.matmul %105, %107, %cst_101 {dimension_numbers = #tpu.dot_dimension_numbers<[1], [0], [0], [1], [0, 0, 1, 1], [], []>} : vector<24x32xbf16>, vector<32x32xbf16>, vector<24x32xf32> -> vector<24x32xf32>
    %109 = arith.addf %102, %108 : vector<24x32xf32>
    %c0_102 = arith.constant 0 : index
    %c0_103 = arith.constant 0 : index
    %110 = vector.load %arg7[%c0_102, %c0_103] : memref<1x32xf32, #tpu.memory_space<vmem>>, vector<1x32xf32>
    %111 = vector.broadcast %110 : vector<1x32xf32> to vector<24x32xf32>
    %112 = arith.addf %109, %111 : vector<24x32xf32>
    %cst_104 = arith.constant 0.000000e+00 : f32
    %113 = vector.broadcast %cst_104 : f32 to vector<24x32xf32>
    %114 = arith.maximumf %112, %113 : vector<24x32xf32>
    %115 = arith.truncf %114 : vector<24x32xf32> to vector<24x32xbf16>
    %116 = vector.shape_cast %115 : vector<24x32xbf16> to vector<3x8x32xbf16>
    %117 = vector.extract_strided_slice %116 {offsets = [0, 0, 0], sizes = [3, 1, 32], strides = [1, 1, 1]} : vector<3x8x32xbf16> to vector<3x1x32xbf16>
    %118 = vector.shape_cast %117 : vector<3x1x32xbf16> to vector<3x32xbf16>
    %c0_105 = arith.constant 0 : index
    %c0_106 = arith.constant 0 : index
    %c0_107 = arith.constant 0 : index
    %119 = vector.load %arg8[%c0_105, %c0_106, %c0_107] : memref<3x32x32xbf16, #tpu.memory_space<vmem>>, vector<1x32x32xbf16>
    %120 = vector.shape_cast %119 : vector<1x32x32xbf16> to vector<32x32xbf16>
    %cst_108 = arith.constant dense<0.000000e+00> : vector<3x32xf32>
    %121 = tpu.matmul %118, %120, %cst_108 {dimension_numbers = #tpu.dot_dimension_numbers<[1], [0], [0], [1], [0, 0, 1, 1], [], []>} : vector<3x32xbf16>, vector<32x32xbf16>, vector<3x32xf32> -> vector<3x32xf32>
    %122 = vector.extract_strided_slice %116 {offsets = [0, 1, 0], sizes = [3, 1, 32], strides = [1, 1, 1]} : vector<3x8x32xbf16> to vector<3x1x32xbf16>
    %123 = vector.shape_cast %122 : vector<3x1x32xbf16> to vector<3x32xbf16>
    %c1_109 = arith.constant 1 : index
    %c0_110 = arith.constant 0 : index
    %c0_111 = arith.constant 0 : index
    %124 = vector.load %arg8[%c1_109, %c0_110, %c0_111] : memref<3x32x32xbf16, #tpu.memory_space<vmem>>, vector<1x32x32xbf16>
    %125 = vector.shape_cast %124 : vector<1x32x32xbf16> to vector<32x32xbf16>
    %cst_112 = arith.constant dense<0.000000e+00> : vector<3x32xf32>
    %126 = tpu.matmul %123, %125, %cst_112 {dimension_numbers = #tpu.dot_dimension_numbers<[1], [0], [0], [1], [0, 0, 1, 1], [], []>} : vector<3x32xbf16>, vector<32x32xbf16>, vector<3x32xf32> -> vector<3x32xf32>
    %127 = arith.addf %121, %126 : vector<3x32xf32>
    %128 = vector.extract_strided_slice %116 {offsets = [0, 2, 0], sizes = [3, 1, 32], strides = [1, 1, 1]} : vector<3x8x32xbf16> to vector<3x1x32xbf16>
    %129 = vector.shape_cast %128 : vector<3x1x32xbf16> to vector<3x32xbf16>
    %c2_113 = arith.constant 2 : index
    %c0_114 = arith.constant 0 : index
    %c0_115 = arith.constant 0 : index
    %130 = vector.load %arg8[%c2_113, %c0_114, %c0_115] : memref<3x32x32xbf16, #tpu.memory_space<vmem>>, vector<1x32x32xbf16>
    %131 = vector.shape_cast %130 : vector<1x32x32xbf16> to vector<32x32xbf16>
    %cst_116 = arith.constant dense<0.000000e+00> : vector<3x32xf32>
    %132 = tpu.matmul %129, %131, %cst_116 {dimension_numbers = #tpu.dot_dimension_numbers<[1], [0], [0], [1], [0, 0, 1, 1], [], []>} : vector<3x32xbf16>, vector<32x32xbf16>, vector<3x32xf32> -> vector<3x32xf32>
    %133 = arith.addf %127, %132 : vector<3x32xf32>
    %c0_117 = arith.constant 0 : index
    %c0_118 = arith.constant 0 : index
    %134 = vector.load %arg9[%c0_117, %c0_118] : memref<3x32xf32, #tpu.memory_space<vmem>>, vector<3x32xf32>
    %135 = arith.addf %133, %134 : vector<3x32xf32>
    %c0_119 = arith.constant 0 : index
    %c0_120 = arith.constant 0 : index
    %c0_121 = arith.constant 0 : index
    %136 = vector.load %arg10[%c0_119, %c0_120, %c0_121] : memref<1x3x32xf32, #tpu.memory_space<vmem>>, vector<1x3x32xf32>
    %137 = vector.shape_cast %136 : vector<1x3x32xf32> to vector<3x32xf32>
    %138 = vector.shape_cast %135 : vector<3x32xf32> to vector<1x3x32xf32>
    tpu.vector_store %arg10[%c0_119, %c0_120, %c0_121], %138 {strides = array<i32>} : memref<1x3x32xf32, #tpu.memory_space<vmem>>, vector<1x3x32xf32>,
    return
  }
  func.func @transform_0(%arg0: i32, %arg1: i32) -> (i32, i32, i32, i32) {
    %c0_i32 = arith.constant 0 : i32
    %c0_i32_0 = arith.constant 0 : i32
    %c0_i32_1 = arith.constant 0 : i32
    return %arg0, %arg1, %c0_i32, %c0_i32_0 : i32, i32, i32, i32
  }
  func.func @transform_1(%arg0: i32, %arg1: i32) -> (i32, i32, i32, i32) {
    %c1_i32 = arith.constant 1 : i32
    %0 = arith.addi %arg1, %c1_i32 : i32
    %c6_i32 = arith.constant 6 : i32
    %1 = arith.muli %c6_i32, %0 : i32
    %c6_i32_0 = arith.constant 6 : i32
    %2 = arith.minsi %1, %c6_i32_0 : i32
    %c0_i32 = arith.constant 0 : i32
    %c0_i32_1 = arith.constant 0 : i32
    %c0_i32_2 = arith.constant 0 : i32
    return %arg0, %2, %c0_i32, %c0_i32_1 : i32, i32, i32, i32
  }
  func.func @transform_2(%arg0: i32, %arg1: i32) -> (i32, i32) {
    %c0_i32 = arith.constant 0 : i32
    %c0_i32_0 = arith.constant 0 : i32
    %c0_i32_1 = arith.constant 0 : i32
    return %c0_i32, %c0_i32_0 : i32, i32
  }
  func.func @transform_3(%arg0: i32, %arg1: i32) -> (i32, i32) {
    %c0_i32 = arith.constant 0 : i32
    %c0_i32_0 = arith.constant 0 : i32
    %c0_i32_1 = arith.constant 0 : i32
    return %c0_i32, %c0_i32_0 : i32, i32
  }
  func.func @transform_4(%arg0: i32, %arg1: i32) -> (i32, i32, i32) {
    %c0_i32 = arith.constant 0 : i32
    %c0_i32_0 = arith.constant 0 : i32
    %c0_i32_1 = arith.constant 0 : i32
    %c0_i32_2 = arith.constant 0 : i32
    return %c0_i32, %c0_i32_0, %c0_i32_1 : i32, i32, i32
  }
  func.func @transform_5(%arg0: i32, %arg1: i32) -> (i32, i32) {
    %c0_i32 = arith.constant 0 : i32
    %c0_i32_0 = arith.constant 0 : i32
    %c0_i32_1 = arith.constant 0 : i32
    return %c0_i32, %c0_i32_0 : i32, i32
  }
  func.func @transform_6(%arg0: i32, %arg1: i32) -> (i32, i32, i32) {
    %c0_i32 = arith.constant 0 : i32
    %c0_i32_0 = arith.constant 0 : i32
    %c0_i32_1 = arith.constant 0 : i32
    %c0_i32_2 = arith.constant 0 : i32
    return %c0_i32, %c0_i32_0, %c0_i32_1 : i32, i32, i32
  }
  func.func @transform_7(%arg0: i32, %arg1: i32) -> (i32, i32) {
    %c0_i32 = arith.constant 0 : i32
    %c0_i32_0 = arith.constant 0 : i32
    return %arg1, %c0_i32 : i32, i32
  }
  func.func @transform_8(%arg0: i32, %arg1: i32) -> (i32, i32, i32) {
    %c0_i32 = arith.constant 0 : i32
    %c0_i32_0 = arith.constant 0 : i32
    return %arg0, %arg1, %c0_i32 : i32, i32, i32
  }
}

</mosaic_0001>

<llo_original>
// kernel: tpu_custom_call.1
$region0: #{tpu_custom_call.1}
  #allocation0 [shape = 'u32[]', space=smem, size = 0x4, offset = 0x4, fixed_abs, tag = 'smem constant byte address 0x4 - core index']
  #allocation1 [shape = 'u32[144,128]{1,0:T(1,128)}', space=vmem, size = 0x12000, scoped, tag = 'internal scratch']
  #allocation2 [shape = 'bf16[4,2,8,32]{3,2,1,0:T(8,128)(2,1)}', space=vmem, size = 0x4000, scoped, tag = 'scratch operand']
  #allocation3 [shape = 'bf16[4,2,8,32]{3,2,1,0:T(8,128)(2,1)}', space=vmem, size = 0x4000, scoped, tag = 'scratch operand']
  #allocation4 [shape = 'bf16[4,2,8,32]{3,2,1,0:T(8,128)(2,1)}', space=vmem, size = 0x4000, scoped, tag = 'scratch operand']
  %s0 = inlined_call_operand.vmem [shape: f32[2,7,16,9], index: 0, kind: input, shape index: {}]
  %s1 = inlined_call_operand.vmem [shape: f32[2,7,16,9], index: 1, kind: input, shape index: {}]
  %s2 = inlined_call_operand.vmem [shape: bf16[9,32], index: 2, kind: input, shape index: {}]
  %s3 = inlined_call_operand.vmem [shape: f32[1,32], index: 3, kind: input, shape index: {}]
  %s4 = inlined_call_operand.vmem [shape: bf16[9,32,32], index: 4, kind: input, shape index: {}]
  %s5 = inlined_call_operand.vmem [shape: f32[1,32], index: 5, kind: input, shape index: {}]
  %s6 = inlined_call_operand.vmem [shape: bf16[3,32,32], index: 6, kind: input, shape index: {}]
  %s7 = inlined_call_operand.vmem [shape: f32[3,32], index: 7, kind: input, shape index: {}]
  %s8 = inlined_call_operand.vmem [shape: f32[2,3,32], index: 8, kind: output, shape index: {}]
  %s9 = sld [smem:[#allocation0]]
  $region65: #{tpu_custom_call.1} parent=0
    _
  %s11 = ssub.s32 1, %s9
  %s12 = scalar_select 0, %s11, %s9
  loop: start=0, step=1, limit=4
  $region2: #{tpu_custom_call.1} parent=0 // loop_pre_header
    _
  $region3: #{tpu_custom_call.1} parent=0 // loop_header
    %s14 = sphi 0, %s18
    %p15 = scmp.ge.s32.totalorder %s14, 4
    %s21 = sphi 0, %s33
    %s22 = sphi 0, %s29
    %s23 = sphi 0, %s21
    %s24 = sphi 0, %s22
    %s25 = sphi 0, %s23
    %s26 = sphi 0, %s24
    %s38 = sphi 0, %s40
    %s41 = sphi 0, %s38
    %s42 = sphi 0, %s41
    %s58 = sphi 0, %s42
    %s74 = sphi 0, %s76
    %s77 = sphi 0, %s74
    %s78 = sphi 0, %s77
    %s94 = sphi 0, %s78
    %s98 = sphi 0, %s98
    %s100 = sphi 0, %s98
    %s101 = sphi 0, %s100
    %s115 = sphi 0, %s101
    %s119 = sphi 0, %s119
    %s121 = sphi 0, %s119
    %s122 = sphi 0, %s121
    %s136 = sphi 0, %s122
    %s140 = sphi 0, %s140
    %s142 = sphi 0, %s140
    %s143 = sphi 0, %s142
    %s157 = sphi 0, %s143
    %s161 = sphi 0, %s161
    %s163 = sphi 0, %s161
    %s164 = sphi 0, %s163
    %s178 = sphi 0, %s164
    %s182 = sphi 0, %s182
    %s184 = sphi 0, %s182
    %s185 = sphi 0, %s184
    %s199 = sphi 0, %s185
    %s205 = sphi 0, %s207
    %s208 = sphi 0, %s205
    %s209 = sphi 0, %s208
    %s225 = sphi 0, %s209
    %s233 = sphi 0, %s235
    %s236 = sphi 0, %s233
    %s237 = sphi 0, %s236
    %s253 = sphi 0, %s237
  $region4: #{tpu_custom_call.1} parent=0 // loop_header_branch
    %17 = sbr.rel (%p15) target = $region8
  $region5: #{tpu_custom_call.1} parent=0 // loop_body
    %s19 = ssub.s32 %s14, 1
    %s20 = ssub.s32 %s14, 2
    %s27 = sadd.s32 1, %s22
    %p28 = scmp.ge.s32.totalorder %s27, 1
    %s29 = scalar_select %p28, 0, %s27
    %s30 = sadd.s32 1, %s21
    %s31 = scalar_select %p28, %s30, %s21
    %p32 = scmp.ge.s32.totalorder %s31, 2
    %s33 = scalar_select %p32, 0, %s31
    %s34 = ssub.s32 %s21, %s33
    %s35 = ssub.s32 %s22, %s29
    %s36 = sor.u32 %s34, %s35
    %p37 = scmp.eq.s32.totalorder %s36, 0
    %s39 = sadd.s32 %s38, 1
    %s40 = scalar_select %p37, %s38, %s39
    %p43 = pneg %p37
    %p44 = scmp.eq.s32.totalorder %s14, 1
    %p45 = por %p43, %p44
    %p46 = scmp.ne.s32.totalorder %s38, %s41
    %p47 = scmp.eq.s32.totalorder %s14, 0
    %p48 = por %p46, %p47
    %p49 = scmp.ne.s32.totalorder %s38, %s41
    %p50 = scmp.eq.s32.totalorder %s19, 1
    %p51 = por %p49, %p50
    %p52 = scmp.ne.s32.totalorder %s41, %s42
    %p53 = scmp.eq.s32.totalorder %s19, 0
    %p54 = por %p52, %p53
    %p55 = scmp.ne.s32.totalorder %s41, %s42
    %p56 = scmp.eq.s32.totalorder %s20, 1
    %p57 = por %p55, %p56
    %p59 = scmp.ne.s32.totalorder %s42, %s58
    %p60 = scmp.eq.s32.totalorder %s20, 0
    %p61 = por %p59, %p60
    %s62 = sadd.s32 %s22, 1
    %s63 = smul.u32 %s62, 6
    %p64 = scmp.lt.s32.totalorder %s63, 6
    %s65 = scalar_select %p64, %s63, 6
    %s66 = sadd.s32 %s29, 1
    %s67 = smul.u32 %s66, 6
    %p68 = scmp.lt.s32.totalorder %s67, 6
    %s69 = scalar_select %p68, %s67, 6
    %s70 = ssub.s32 %s21, %s33
    %s71 = ssub.s32 %s65, %s69
    %s72 = sor.u32 %s70, %s71
    %p73 = scmp.eq.s32.totalorder %s72, 0
    %s75 = sadd.s32 %s74, 1
    %s76 = scalar_select %p73, %s74, %s75
    %p79 = pneg %p73
    %p80 = scmp.eq.s32.totalorder %s14, 1
    %p81 = por %p79, %p80
    %p82 = scmp.ne.s32.totalorder %s74, %s77
    %p83 = scmp.eq.s32.totalorder %s14, 0
    %p84 = por %p82, %p83
    %p85 = scmp.ne.s32.totalorder %s74, %s77
    %p86 = scmp.eq.s32.totalorder %s19, 1
    %p87 = por %p85, %p86
    %p88 = scmp.ne.s32.totalorder %s77, %s78
    %p89 = scmp.eq.s32.totalorder %s19, 0
    %p90 = por %p88, %p89
    %p91 = scmp.ne.s32.totalorder %s77, %s78
    %p92 = scmp.eq.s32.totalorder %s20, 1
    %p93 = por %p91, %p92
    %p95 = scmp.ne.s32.totalorder %s78, %s94
    %p96 = scmp.eq.s32.totalorder %s20, 0
    %p97 = por %p95, %p96
    %s99 = sadd.s32 %s98, 1
    %p102 = scmp.eq.s32.totalorder %s14, 1
    %p103 = scmp.ne.s32.totalorder %s98, %s100
    %p104 = scmp.eq.s32.totalorder %s14, 0
    %p105 = por %p103, %p104
    %p106 = scmp.ne.s32.totalorder %s98, %s100
    %p107 = scmp.eq.s32.totalorder %s19, 1
    %p108 = por %p106, %p107
    %p109 = scmp.ne.s32.totalorder %s100, %s101
    %p110 = scmp.eq.s32.totalorder %s19, 0
    %p111 = por %p109, %p110
    %p112 = scmp.ne.s32.totalorder %s100, %s101
    %p113 = scmp.eq.s32.totalorder %s20, 1
    %p114 = por %p112, %p113
    %p116 = scmp.ne.s32.totalorder %s101, %s115
    %p117 = scmp.eq.s32.totalorder %s20, 0
    %p118 = por %p116, %p117
    %s120 = sadd.s32 %s119, 1
    %p123 = scmp.eq.s32.totalorder %s14, 1
    %p124 = scmp.ne.s32.totalorder %s119, %s121
    %p125 = scmp.eq.s32.totalorder %s14, 0
    %p126 = por %p124, %p125
    %p127 = scmp.ne.s32.totalorder %s119, %s121
    %p128 = scmp.eq.s32.totalorder %s19, 1
    %p129 = por %p127, %p128
    %p130 = scmp.ne.s32.totalorder %s121, %s122
    %p131 = scmp.eq.s32.totalorder %s19, 0
    %p132 = por %p130, %p131
    %p133 = scmp.ne.s32.totalorder %s121, %s122
    %p134 = scmp.eq.s32.totalorder %s20, 1
    %p135 = por %p133, %p134
    %p137 = scmp.ne.s32.totalorder %s122, %s136
    %p138 = scmp.eq.s32.totalorder %s20, 0
    %p139 = por %p137, %p138
    %s141 = sadd.s32 %s140, 1
    %p144 = scmp.eq.s32.totalorder %s14, 1
    %p145 = scmp.ne.s32.totalorder %s140, %s142
    %p146 = scmp.eq.s32.totalorder %s14, 0
    %p147 = por %p145, %p146
    %p148 = scmp.ne.s32.totalorder %s140, %s142
    %p149 = scmp.eq.s32.totalorder %s19, 1
    %p150 = por %p148, %p149
    %p151 = scmp.ne.s32.totalorder %s142, %s143
    %p152 = scmp.eq.s32.totalorder %s19, 0
    %p153 = por %p151, %p152
    %p154 = scmp.ne.s32.totalorder %s142, %s143
    %p155 = scmp.eq.s32.totalorder %s20, 1
    %p156 = por %p154, %p155
    %p158 = scmp.ne.s32.totalorder %s143, %s157
    %p159 = scmp.eq.s32.totalorder %s20, 0
    %p160 = por %p158, %p159
    %s162 = sadd.s32 %s161, 1
    %p165 = scmp.eq.s32.totalorder %s14, 1
    %p166 = scmp.ne.s32.totalorder %s161, %s163
    %p167 = scmp.eq.s32.totalorder %s14, 0
    %p168 = por %p166, %p167
    %p169 = scmp.ne.s32.totalorder %s161, %s163
    %p170 = scmp.eq.s32.totalorder %s19, 1
    %p171 = por %p169, %p170
    %p172 = scmp.ne.s32.totalorder %s163, %s164
    %p173 = scmp.eq.s32.totalorder %s19, 0
    %p174 = por %p172, %p173
    %p175 = scmp.ne.s32.totalorder %s163, %s164
    %p176 = scmp.eq.s32.totalorder %s20, 1
    %p177 = por %p175, %p176
    %p179 = scmp.ne.s32.totalorder %s164, %s178
    %p180 = scmp.eq.s32.totalorder %s20, 0
    %p181 = por %p179, %p180
    %s183 = sadd.s32 %s182, 1
    %p186 = scmp.eq.s32.totalorder %s14, 1
    %p187 = scmp.ne.s32.totalorder %s182, %s184
    %p188 = scmp.eq.s32.totalorder %s14, 0
    %p189 = por %p187, %p188
    %p190 = scmp.ne.s32.totalorder %s182, %s184
    %p191 = scmp.eq.s32.totalorder %s19, 1
    %p192 = por %p190, %p191
    %p193 = scmp.ne.s32.totalorder %s184, %s185
    %p194 = scmp.eq.s32.totalorder %s19, 0
    %p195 = por %p193, %p194
    %p196 = scmp.ne.s32.totalorder %s184, %s185
    %p197 = scmp.eq.s32.totalorder %s20, 1
    %p198 = por %p196, %p197
    %p200 = scmp.ne.s32.totalorder %s185, %s199
    %p201 = scmp.eq.s32.totalorder %s20, 0
    %p202 = por %p200, %p201
    %s203 = ssub.s32 %s22, %s29
    %p204 = scmp.eq.s32.totalorder %s203, 0
    %s206 = sadd.s32 %s205, 1
    %s207 = scalar_select %p204, %s205, %s206
    %p210 = pneg %p204
    %p211 = scmp.eq.s32.totalorder %s14, 1
    %p212 = por %p210, %p211
    %p213 = scmp.ne.s32.totalorder %s205, %s208
    %p214 = scmp.eq.s32.totalorder %s14, 0
    %p215 = por %p213, %p214
    %p216 = scmp.ne.s32.totalorder %s205, %s208
    %p217 = scmp.eq.s32.totalorder %s19, 1
    %p218 = por %p216, %p217
    %p219 = scmp.ne.s32.totalorder %s208, %s209
    %p220 = scmp.eq.s32.totalorder %s19, 0
    %p221 = por %p219, %p220
    %p222 = scmp.ne.s32.totalorder %s208, %s209
    %p223 = scmp.eq.s32.totalorder %s20, 1
    %p224 = por %p222, %p223
    %p226 = scmp.ne.s32.totalorder %s209, %s225
    %p227 = scmp.eq.s32.totalorder %s20, 0
    %p228 = por %p226, %p227
    %s229 = ssub.s32 %s21, %s33
    %s230 = ssub.s32 %s22, %s29
    %s231 = sor.u32 %s229, %s230
    %p232 = scmp.eq.s32.totalorder %s231, 0
    %s234 = sadd.s32 %s233, 1
    %s235 = scalar_select %p232, %s233, %s234
    %p238 = pneg %p232
    %p239 = scmp.eq.s32.totalorder %s14, 1
    %p240 = por %p238, %p239
    %p241 = scmp.ne.s32.totalorder %s233, %s236
    %p242 = scmp.eq.s32.totalorder %s14, 0
    %p243 = por %p241, %p242
    %p244 = scmp.ne.s32.totalorder %s233, %s236
    %p245 = scmp.eq.s32.totalorder %s19, 1
    %p246 = por %p244, %p245
    %p247 = scmp.ne.s32.totalorder %s236, %s237
    %p248 = scmp.eq.s32.totalorder %s19, 0
    %p249 = por %p247, %p248
    %p250 = scmp.ne.s32.totalorder %s236, %s237
    %p251 = scmp.eq.s32.totalorder %s20, 1
    %p252 = por %p250, %p251
    %p254 = scmp.ne.s32.totalorder %s237, %s253
    %p255 = scmp.eq.s32.totalorder %s20, 0
    %p256 = por %p254, %p255
    %p257 = scmp.le.s32.totalorder 1, %s14
    %p258 = scmp.lt.s32.totalorder %s14, 3
    %p259 = pnand %p257, %p258
    %p260 = pneg %p259
    // Predicated region
    $region9: #{tpu_custom_call.1} parent=5 // pred_check
      _
    $region10: #{tpu_custom_call.1} parent=5 // pred_check_branch
      %262 = sbr.rel (%p259) target = $region12
    $region11: #{tpu_custom_call.1} parent=5 // pred_region
      %s263 = ssub.s32 %s14, 1
      // Predicated region
      $region13: #{tpu_custom_call.1} parent=11 // pred_check
        %p264 = pneg %p111
      $region14: #{tpu_custom_call.1} parent=11 // pred_check_branch
        %266 = sbr.rel (%p264) target = $region16
      $region15: #{tpu_custom_call.1} parent=11 // pred_region
        _
      $region16: #{tpu_custom_call.1} parent=11 // pred_fallthru
        _
      // Predicated region
      $region17: #{tpu_custom_call.1} parent=11 // pred_check
        %p267 = pneg %p132
      $region18: #{tpu_custom_call.1} parent=11 // pred_check_branch
        %269 = sbr.rel (%p267) target = $region20
      $region19: #{tpu_custom_call.1} parent=11 // pred_region
        _
      $region20: #{tpu_custom_call.1} parent=11 // pred_fallthru
        _
      // Predicated region
      $region21: #{tpu_custom_call.1} parent=11 // pred_check
        %p270 = pneg %p153
      $region22: #{tpu_custom_call.1} parent=11 // pred_check_branch
        %272 = sbr.rel (%p270) target = $region24
      $region23: #{tpu_custom_call.1} parent=11 // pred_region
        _
      $region24: #{tpu_custom_call.1} parent=11 // pred_fallthru
        _
      // Predicated region
      $region25: #{tpu_custom_call.1} parent=11 // pred_check
        %p273 = pneg %p174
      $region26: #{tpu_custom_call.1} parent=11 // pred_check_branch
        %275 = sbr.rel (%p273) target = $region28
      $region27: #{tpu_custom_call.1} parent=11 // pred_region
        _
      $region28: #{tpu_custom_call.1} parent=11 // pred_fallthru
        _
      // Predicated region
      $region29: #{tpu_custom_call.1} parent=11 // pred_check
        %p276 = pneg %p195
      $region30: #{tpu_custom_call.1} parent=11 // pred_check_branch
        %278 = sbr.rel (%p276) target = $region32
      $region31: #{tpu_custom_call.1} parent=11 // pred_region
        _
      $region32: #{tpu_custom_call.1} parent=11 // pred_fallthru
        _
      // Predicated region
      $region33: #{tpu_custom_call.1} parent=11 // pred_check
        %p279 = pneg %p221
      $region34: #{tpu_custom_call.1} parent=11 // pred_check_branch
        %281 = sbr.rel (%p279) target = $region36
      $region35: #{tpu_custom_call.1} parent=11 // pred_region
        %p282 = scmp.lt.s32.totalorder %s24, 0
        %s283 = scalar_select %p282, %s24, 0
        %s284 = smul.addr %s283, 4
        %s285 = scalar_lea.vmem %s7, %s284
      $region36: #{tpu_custom_call.1} parent=11 // pred_fallthru
        _
    $region12: #{tpu_custom_call.1} parent=5 // pred_fallthru
      _
    %p286 = scmp.lt.s32.totalorder %s14, 2
    // Predicated region
    $region37: #{tpu_custom_call.1} parent=5 // pred_check
      %p287 = pneg %p286
    $region38: #{tpu_custom_call.1} parent=5 // pred_check_branch
      %289 = sbr.rel (%p287) target = $region40
    $region39: #{tpu_custom_call.1} parent=5 // pred_region
      // Predicated region
      $region41: #{tpu_custom_call.1} parent=39 // pred_check
        %p290 = pneg %p48
      $region42: #{tpu_custom_call.1} parent=39 // pred_check_branch
        %292 = sbr.rel (%p290) target = $region44
      $region43: #{tpu_custom_call.1} parent=39 // pred_region
        %s293 = smul.u32 6, %s22
        %s294 = ssub.s32 7, %s293
        %p295 = scmp.lt.s32.totalorder %s294, 6
        %s296 = scalar_select %p295, %s294, 6
        %s297 = smul.u32 128, %s296
        %s298 = smul.u32 %s297, 2
        %p299 = scmp.lt.s32.totalorder %s21, 1
        %s300 = scalar_select %p299, %s21, 1
        %p301 = scmp.lt.s32.totalorder %s293, 6
        %s302 = scalar_select %p301, %s293, 6
        %s303 = smul.addr %s302, 2
        %s304 = smul.addr %s300, 14
        %s305 = sadd.s32 %s303, %s304
        %s306 = smul.addr %s305, 8
        %s307 = scalar_lea.vmem %s0, %s306
        %s308 = smul.u32 6, %s22
        %s309 = ssub.s32 7, %s308
        %p310 = scmp.lt.s32.totalorder %s309, 6
        %s311 = scalar_select %p310, %s309, 6
        %s312 = smul.u32 128, %s311
        %s313 = smul.u32 %s312, 2
      $region44: #{tpu_custom_call.1} parent=39 // pred_fallthru
        _
      // Predicated region
      $region45: #{tpu_custom_call.1} parent=39 // pred_check
        %p314 = pneg %p84
      $region46: #{tpu_custom_call.1} parent=39 // pred_check_branch
        %316 = sbr.rel (%p314) target = $region48
      $region47: #{tpu_custom_call.1} parent=39 // pred_region
        %s317 = sadd.s32 %s22, 1
        %s318 = smul.u32 %s317, 6
        %p319 = scmp.lt.s32.totalorder %s318, 6
        %s320 = scalar_select %p319, %s318, 6
        %p321 = scmp.lt.s32.totalorder %s21, 1
        %s322 = scalar_select %p321, %s21, 1
        %p323 = scmp.lt.s32.totalorder %s320, 6
        %s324 = scalar_select %p323, %s320, 6
        %s325 = smul.addr %s324, 2
        %s326 = smul.addr %s322, 14
        %s327 = sadd.s32 %s325, %s326
        %s328 = smul.addr %s327, 8
        %s329 = scalar_lea.vmem %s1, %s328
        %s330 = sadd.s32 %s22, 1
        %s331 = smul.u32 %s330, 6
        %p332 = scmp.lt.s32.totalorder %s331, 6
        %s333 = scalar_select %p332, %s331, 6
      $region48: #{tpu_custom_call.1} parent=39 // pred_fallthru
        _
    $region40: #{tpu_custom_call.1} parent=5 // pred_fallthru
      _
    %p334 = scmp.le.s32.totalorder 1, %s14
    %p335 = scmp.lt.s32.totalorder %s14, 3
    %p336 = pnand %p334, %p335
    %p337 = pneg %p336
    // Predicated region
    $region49: #{tpu_custom_call.1} parent=5 // pred_check
      _
    $region50: #{tpu_custom_call.1} parent=5 // pred_check_branch
      %339 = sbr.rel (%p336) target = $region52
    $region51: #{tpu_custom_call.1} parent=5 // pred_region
      %s340 = ssub.s32 %s14, 1
      %s341 = smul.u32 6, %s24
      %s342 = ssub.s32 7, %s341
      %p343 = scmp.lt.s32.totalorder %s342, 6
      %s344 = scalar_select %p343, %s342, 6
      %s345 = smul.u32 128, %s344
      %s346 = smul.u32 %s345, 2
      %p347 = scmp.lt.s32.totalorder %s23, 1
      %s348 = scalar_select %p347, %s23, 1
      %p349 = scmp.lt.s32.totalorder %s341, 6
      %s350 = scalar_select %p349, %s341, 6
      %s351 = smul.addr %s350, 2
      %s352 = smul.addr %s348, 14
      %s353 = sadd.s32 %s351, %s352
      %s354 = smul.addr %s353, 8
      %s355 = scalar_lea.vmem %s0, %s354
      %p356 = pneg %p54
      %p357 = pneg %p51
      %s358 = sadd.s32 %s24, 1
      %s359 = smul.u32 %s358, 6
      %p360 = scmp.lt.s32.totalorder %s359, 6
      %s361 = scalar_select %p360, %s359, 6
      %p362 = scmp.lt.s32.totalorder %s23, 1
      %s363 = scalar_select %p362, %s23, 1
      %p364 = scmp.lt.s32.totalorder %s361, 6
      %s365 = scalar_select %p364, %s361, 6
      %s366 = smul.addr %s365, 2
      %s367 = smul.addr %s363, 14
      %s368 = sadd.s32 %s366, %s367
      %s369 = smul.addr %s368, 8
      %s370 = scalar_lea.vmem %s1, %s369
      %p371 = pneg %p90
      %p372 = pneg %p87
      %p373 = pneg %p111
      %p374 = pneg %p108
      %p375 = pneg %p132
      %p376 = pneg %p129
      %p377 = pneg %p153
      %p378 = pneg %p150
      %p379 = pneg %p174
      %p380 = pneg %p171
      %p381 = pneg %p195
      %p382 = pneg %p192
      %p383 = scmp.lt.s32.totalorder %s24, 0
      %s384 = scalar_select %p383, %s24, 0
      %s385 = smul.addr %s384, 4
      %s386 = scalar_lea.vmem %s7, %s385
      %p387 = pneg %p221
      %p388 = pneg %p218
      %p389 = pneg %p249
      %p390 = pneg %p246
      %p391 = scmp.lt.s32.totalorder %s23, 1
      %s392 = scalar_select %p391, %s23, 1
      %p393 = scmp.lt.s32.totalorder %s24, 0
      %s394 = scalar_select %p393, %s24, 0
      %s395 = sadd.s32 %s394, %s392
      %s396 = smul.addr %s395, 4
      %s397 = scalar_lea.vmem %s8, %s396
      %s398 = smul.u32 6, %s24
      %s399 = ssub.s32 7, %s398
      %p400 = scmp.lt.s32.totalorder %s399, 6
      %s401 = scalar_select %p400, %s399, 6
      %s402 = smul.u32 128, %s401
      %s403 = smul.u32 %s402, 2
      %p404 = scmp.lt.s32.totalorder %s23, 1
      %s405 = scalar_select %p404, %s23, 1
      %p406 = scmp.lt.s32.totalorder %s398, 6
      %s407 = scalar_select %p406, %s398, 6
      %s408 = smul.addr %s407, 2
      %s409 = smul.addr %s405, 14
      %s410 = sadd.s32 %s408, %s409
      %s411 = smul.addr %s410, 8
      %s412 = scalar_lea.vmem %s0, %s411
      %s413 = smul.u32 6, %s24
      %s414 = ssub.s32 7, %s413
      %p415 = scmp.lt.s32.totalorder %s414, 6
      %s416 = scalar_select %p415, %s414, 6
      %s417 = smul.u32 128, %s416
      %s418 = smul.u32 %s417, 2
      %s419 = sadd.s32 %s24, 1
      %s420 = smul.u32 %s419, 6
      %p421 = scmp.lt.s32.totalorder %s420, 6
      %s422 = scalar_select %p421, %s420, 6
      %p423 = scmp.lt.s32.totalorder %s23, 1
      %s424 = scalar_select %p423, %s23, 1
      %p425 = scmp.lt.s32.totalorder %s422, 6
      %s426 = scalar_select %p425, %s422, 6
      %s427 = smul.addr %s426, 2
      %s428 = smul.addr %s424, 14
      %s429 = sadd.s32 %s427, %s428
      %s430 = smul.addr %s429, 8
      %s431 = scalar_lea.vmem %s1, %s430
      %s432 = sadd.s32 %s24, 1
      %s433 = smul.u32 %s432, 6
      %p434 = scmp.lt.s32.totalorder %s433, 6
      %s435 = scalar_select %p434, %s433, 6
      %p436 = scmp.lt.s32.totalorder %s24, 0
      %s437 = scalar_select %p436, %s24, 0
      %s438 = smul.addr %s437, 4
      %s439 = scalar_lea.vmem %s7, %s438
      %p440 = scmp.lt.s32.totalorder %s23, 1
      %s441 = scalar_select %p440, %s23, 1
      %p442 = scmp.lt.s32.totalorder %s24, 0
      %s443 = scalar_select %p442, %s24, 0
      %s444 = sadd.s32 %s443, %s441
      %s445 = smul.addr %s444, 4
      %s446 = scalar_lea.vmem %s8, %s445
      %v448 = vld [vmem:[%s2] sm:$0xf]
      %v449 = vld [vmem:[%s2 + $0x4] sm:$0x1]
      %v450 = vld [vmem:[%s3] sm:$0x1]
      %v451 = vld [vmem:[%s412] sm:$0xff]
      %v452 = vld [vmem:[%s412 + $0x8] sm:$0xff]
      %v453 = vld [vmem:[%s412 + $0x10] sm:$0xff]
      %v454 = vld [vmem:[%s412 + $0x18] sm:$0xff]
      %v455 = vld [vmem:[%s412 + $0x20] sm:$0xff]
      %v456 = vld [vmem:[%s412 + $0x28] sm:$0xff]
      %v457 = vld [vmem:[%s412 + $0x30] sm:$0xff]
      %v458 = vld [vmem:[%s412 + $0x38] sm:$0xff]
      %v459 = vld [vmem:[%s412 + $0x40] sm:$0xff]
      %v460 = vld [vmem:[%s412 + $0x48] sm:$0xff]
      %v461 = vld [vmem:[%s412 + $0x50] sm:$0xff]
      %v462 = vld [vmem:[%s412 + $0x58] sm:$0xff]
      %v463 = vpack.c.bf16 %v452, %v451
      %v464 = vpack.c.bf16 %v454, %v453
      %v465 = vpack.c.bf16 %v456, %v455
      %v466 = vpack.c.bf16 %v458, %v457
      %v467 = vpack.c.bf16 %v460, %v459
      %v468 = vpack.c.bf16 %v462, %v461
      %v470 = vlaneseq
      %v471 = vshrl.u32 %v470, 7
      %v472 = vsub.s32 0, %v471
      %v473 = vrot.slane %v450, %v472
      %v477 = vunpack.c.l.b16 %v448
      %v478 = vunpack.c.l.b16 %v449
      %v479 = vpack.c.b16 %v478, %v477
      %vm480 = vcmask 72704
      %v482 = vsel %vm480, %v463, 0
      %v485 = vsel %vm480, %v464, 0
      %v488 = vsel %vm480, %v465, 0
      %v491 = vsel %vm480, %v466, 0
      %v494 = vsel %vm480, %v467, 0
      %v497 = vsel %vm480, %v468, 0
      %vm499 = vcmask 1043456
      %vm500 = vcmask 1044480
      %v501 = vsel %vm499, 4294967295, 65535
      %v502 = vsel %vm500, %v501, 0
      %v504 = vand.u32 %v479, %v502
      %506 = vmatprep.subr.bf16.mxu0 0
      %507 = vmatpush1.bf16.msra.mxu0 0
      %508 = vmatprep.subr.bf16.mxu0 0
      %509 = vmatpush1.bf16.msra.mxu0 0
      %510 = vmatprep.subr.bf16.mxu0 0
      %511 = vmatpush1.bf16.msra.mxu0 0
      %512 = vmatprep.subr.bf16.mxu0 0
      %513 = vmatpush1.bf16.msra.mxu0 0
      %514 = vmatprep.subr.bf16.mxu0 0
      %515 = vmatpush1.bf16.msra.mxu0 0
      %516 = vmatprep.subr.bf16.mxu0 0
      %517 = vmatpush1.bf16.msra.mxu0 0
      %518 = vmatprep.subr.bf16.mxu0 0
      %519 = vmatpush1.bf16.msra.mxu0 0
      %520 = vmatprep.subr.bf16.mxu0 0
      %521 = vmatpush1.bf16.msra.mxu0 %v504
      %522 = vmatprep.subr.bf16.mxu0 0
      %523 = vmatpush2.bf16.msra.mxu0 0
      %524 = vmatprep.subr.bf16.mxu0 0
      %525 = vmatpush2.bf16.msra.mxu0 0
      %526 = vmatprep.subr.bf16.mxu0 0
      %527 = vmatpush2.bf16.msra.mxu0 0
      %528 = vmatprep.subr.bf16.mxu0 0
      %529 = vmatpush2.bf16.msra.mxu0 0
      %530 = vmatprep.subr.bf16.mxu0 0
      %531 = vmatpush2.bf16.msra.mxu0 0
      %532 = vmatprep.subr.bf16.mxu0 0
      %533 = vmatpush2.bf16.msra.mxu0 0
      %534 = vmatprep.subr.bf16.mxu0 0
      %535 = vmatpush2.bf16.msra.mxu0 0
      %536 = vmatprep.subr.bf16.mxu0 0
      %537 = vmatpush2.bf16.msra.mxu0 0
      %538 = vmatprep.mubr.bf16.mxu0 0
      %539 = vmatmul.mubr.bf16.gmra.mxu0 %v482
      %v540 = vpop.f32.mrf.mxu0
      %v541 = vadd.f32 %v473, %v540
      %v542 = vpop.f32.mrf.mxu0
      %v543 = vpop.f32.mrf.mxu0
      %v544 = vadd.f32 %v473, %v543
      %v545 = vpop.f32.mrf.mxu0
      %546 = vmatprep.mubr.bf16.mxu0 0
      %547 = vmatmul.mubr.bf16.gmra.mxu0 %v485
      %v548 = vpop.f32.mrf.mxu0
      %v549 = vadd.f32 %v473, %v548
      %v550 = vpop.f32.mrf.mxu0
      %v551 = vpop.f32.mrf.mxu0
      %v552 = vadd.f32 %v473, %v551
      %v553 = vpop.f32.mrf.mxu0
      %554 = vmatprep.mubr.bf16.mxu0 0
      %555 = vmatmul.mubr.bf16.gmra.mxu0 %v488
      %v556 = vpop.f32.mrf.mxu0
      %v557 = vadd.f32 %v473, %v556
      %v558 = vpop.f32.mrf.mxu0
      %v559 = vpop.f32.mrf.mxu0
      %v560 = vadd.f32 %v473, %v559
      %v561 = vpop.f32.mrf.mxu0
      %562 = vmatprep.mubr.bf16.mxu0 0
      %563 = vmatmul.mubr.bf16.gmra.mxu0 %v491
      %v564 = vpop.f32.mrf.mxu0
      %v565 = vadd.f32 %v473, %v564
      %v566 = vpop.f32.mrf.mxu0
      %v567 = vpop.f32.mrf.mxu0
      %v568 = vadd.f32 %v473, %v567
      %v569 = vpop.f32.mrf.mxu0
      %570 = vmatprep.mubr.bf16.mxu0 0
      %571 = vmatmul.mubr.bf16.gmra.mxu0 %v494
      %v572 = vpop.f32.mrf.mxu0
      %v573 = vadd.f32 %v473, %v572
      %v574 = vpop.f32.mrf.mxu0
      %v575 = vpop.f32.mrf.mxu0
      %v576 = vadd.f32 %v473, %v575
      %v577 = vpop.f32.mrf.mxu0
      %578 = vmatprep.mubr.bf16.mxu0 0
      %579 = vmatmul.mubr.bf16.gmra.mxu0 %v497
      %v580 = vpop.f32.mrf.mxu0
      %v581 = vadd.f32 %v473, %v580
      %v582 = vpop.f32.mrf.mxu0
      %v583 = vpop.f32.mrf.mxu0
      %v584 = vadd.f32 %v473, %v583
      %v585 = vpop.f32.mrf.mxu0
      %586 = vdwg.mxu0
      %v587 = vmax.f32 %v541, 0.0
      %v588 = vmax.f32 %v544, 0.0
      %v589 = vmax.f32 %v549, 0.0
      %v590 = vmax.f32 %v552, 0.0
      %v591 = vmax.f32 %v557, 0.0
      %v592 = vmax.f32 %v560, 0.0
      %v593 = vmax.f32 %v565, 0.0
      %v594 = vmax.f32 %v568, 0.0
      %v595 = vmax.f32 %v573, 0.0
      %v596 = vmax.f32 %v576, 0.0
      %v597 = vmax.f32 %v581, 0.0
      %v598 = vmax.f32 %v584, 0.0
      %v599 = vpack.c.bf16 %v588, %v587
      %v600 = vpack.c.bf16 %v590, %v589
      %v601 = vpack.c.bf16 %v592, %v591
      %v602 = vpack.c.bf16 %v594, %v593
      %v603 = vpack.c.bf16 %v596, %v595
      %v604 = vpack.c.bf16 %v598, %v597
      %vm605 = vcmask 257024
      %606 = vst.msk [vmem:[#allocation2] sm:$0xf] %vm605, %v599
      %607 = vst.msk [vmem:[#allocation2 + $0x4] sm:$0xf] %vm605, %v600
      %608 = vst.msk [vmem:[#allocation2 + $0x8] sm:$0xf] %vm605, %v601
      %609 = vst.msk [vmem:[#allocation2 + $0xc] sm:$0xf] %vm605, %v602
      %610 = vst.msk [vmem:[#allocation2 + $0x10] sm:$0xf] %vm605, %v603
      %611 = vst.msk [vmem:[#allocation2 + $0x14] sm:$0xf] %vm605, %v604
      %v618 = vunpack.c.h.b16 %v599
      %v619 = vunpack.c.h.b16 %v600
      %v620 = vunpack.c.h.b16 %v601
      %v621 = vunpack.c.h.b16 %v602
      %v622 = vunpack.c.h.b16 %v603
      %v623 = vunpack.c.h.b16 %v604
      %v624 = vpack.c.b16 %v618, %v618
      %v625 = vpack.c.b16 %v619, %v619
      %v626 = vpack.c.b16 %v620, %v620
      %v627 = vpack.c.b16 %v621, %v621
      %v628 = vpack.c.b16 %v622, %v622
      %v629 = vpack.c.b16 %v623, %v623
      %636 = vst.msk [vmem:[#allocation3] sm:$0xf] %vm605, %v624
      %637 = vst.msk [vmem:[#allocation3 + $0x4] sm:$0xf] %vm605, %v625
      %638 = vst.msk [vmem:[#allocation3 + $0x8] sm:$0xf] %vm605, %v626
      %639 = vst.msk [vmem:[#allocation3 + $0xc] sm:$0xf] %vm605, %v627
      %640 = vst.msk [vmem:[#allocation3 + $0x10] sm:$0xf] %vm605, %v628
      %641 = vst.msk [vmem:[#allocation3 + $0x14] sm:$0xf] %vm605, %v629
      %v642 = vunpack.c.l.b16 %v599
      %v643 = vunpack.c.l.b16 %v600
      %v644 = vunpack.c.l.b16 %v601
      %v645 = vunpack.c.l.b16 %v602
      %v646 = vunpack.c.l.b16 %v603
      %v647 = vunpack.c.l.b16 %v604
      %v648 = vpack.c.b16 %v642, %v642
      %v649 = vpack.c.b16 %v643, %v643
      %v650 = vpack.c.b16 %v644, %v644
      %v651 = vpack.c.b16 %v645, %v645
      %v652 = vpack.c.b16 %v646, %v646
      %v653 = vpack.c.b16 %v647, %v647
      %vm654 = vsmask.f32 3328
      %vm655 = vsmask.f32 7440
      %vm656 = vmor %vm654, %vm655
      %v658 = vshrl.u32 %v648, 16
      %v660 = vrot.slane %v658, 4
      %v661 = vshll.u32 %v648, 16
      %v663 = vrot.slane %v661, 5
      %v664 = vor.u32 %v660, %v663
      %v665 = vrot.slane %v664, 4
      %v667 = vshll.u32 %v624, 16
      %v669 = vrot.slane %v667, 5
      %v670 = vsel %vm656, %v665, %v669
      %v672 = vshrl.u32 %v649, 16
      %v674 = vrot.slane %v672, 4
      %v675 = vshll.u32 %v649, 16
      %v677 = vrot.slane %v675, 5
      %v678 = vor.u32 %v674, %v677
      %v679 = vrot.slane %v678, 4
      %v681 = vshll.u32 %v625, 16
      %v683 = vrot.slane %v681, 5
      %v684 = vsel %vm656, %v679, %v683
      %v686 = vshrl.u32 %v650, 16
      %v688 = vrot.slane %v686, 4
      %v689 = vshll.u32 %v650, 16
      %v691 = vrot.slane %v689, 5
      %v692 = vor.u32 %v688, %v691
      %v693 = vrot.slane %v692, 4
      %v695 = vshll.u32 %v626, 16
      %v697 = vrot.slane %v695, 5
      %v698 = vsel %vm656, %v693, %v697
      %v700 = vshrl.u32 %v651, 16
      %v702 = vrot.slane %v700, 4
      %v703 = vshll.u32 %v651, 16
      %v705 = vrot.slane %v703, 5
      %v706 = vor.u32 %v702, %v705
      %v707 = vrot.slane %v706, 4
      %v709 = vshll.u32 %v627, 16
      %v711 = vrot.slane %v709, 5
      %v712 = vsel %vm656, %v707, %v711
      %v714 = vshrl.u32 %v652, 16
      %v716 = vrot.slane %v714, 4
      %v717 = vshll.u32 %v652, 16
      %v719 = vrot.slane %v717, 5
      %v720 = vor.u32 %v716, %v719
      %v721 = vrot.slane %v720, 4
      %v723 = vshll.u32 %v628, 16
      %v725 = vrot.slane %v723, 5
      %v726 = vsel %vm656, %v721, %v725
      %v728 = vshrl.u32 %v653, 16
      %v730 = vrot.slane %v728, 4
      %v731 = vshll.u32 %v653, 16
      %v733 = vrot.slane %v731, 5
      %v734 = vor.u32 %v730, %v733
      %v735 = vrot.slane %v734, 4
      %v737 = vshll.u32 %v629, 16
      %v739 = vrot.slane %v737, 5
      %v740 = vsel %vm656, %v735, %v739
      %747 = vst.msk [vmem:[#allocation4] sm:$0xf] %vm605, %v670
      %748 = vst.msk [vmem:[#allocation4 + $0x4] sm:$0xf] %vm605, %v684
      %749 = vst.msk [vmem:[#allocation4 + $0x8] sm:$0xf] %vm605, %v698
      %750 = vst.msk [vmem:[#allocation4 + $0xc] sm:$0xf] %vm605, %v712
      %751 = vst.msk [vmem:[#allocation4 + $0x10] sm:$0xf] %vm605, %v726
      %752 = vst.msk [vmem:[#allocation4 + $0x14] sm:$0xf] %vm605, %v740
      %v753 = vld [vmem:[%s431] sm:$0xff]
      %v754 = vld [vmem:[%s431 + $0x8] sm:$0xff]
      %v755 = vpack.c.bf16 %v754, %v753
      %v757 = vsel %vm480, %v755, 0
      %759 = vmatprep.subr.bf16.mxu0 0
      %760 = vmatpush1.bf16.msra.mxu0 0
      %761 = vmatprep.subr.bf16.mxu0 0
      %762 = vmatpush1.bf16.msra.mxu0 0
      %763 = vmatprep.subr.bf16.mxu0 0
      %764 = vmatpush1.bf16.msra.mxu0 0
      %765 = vmatprep.subr.bf16.mxu0 0
      %766 = vmatpush1.bf16.msra.mxu0 0
      %767 = vmatprep.subr.bf16.mxu0 0
      %768 = vmatpush1.bf16.msra.mxu0 0
      %769 = vmatprep.subr.bf16.mxu0 0
      %770 = vmatpush1.bf16.msra.mxu0 0
      %771 = vmatprep.subr.bf16.mxu0 0
      %772 = vmatpush1.bf16.msra.mxu0 0
      %773 = vmatprep.subr.bf16.mxu0 0
      %774 = vmatpush1.bf16.msra.mxu0 %v504
      %775 = vmatprep.subr.bf16.mxu0 0
      %776 = vmatpush2.bf16.msra.mxu0 0
      %777 = vmatprep.subr.bf16.mxu0 0
      %778 = vmatpush2.bf16.msra.mxu0 0
      %779 = vmatprep.subr.bf16.mxu0 0
      %780 = vmatpush2.bf16.msra.mxu0 0
      %781 = vmatprep.subr.bf16.mxu0 0
      %782 = vmatpush2.bf16.msra.mxu0 0
      %783 = vmatprep.subr.bf16.mxu0 0
      %784 = vmatpush2.bf16.msra.mxu0 0
      %785 = vmatprep.subr.bf16.mxu0 0
      %786 = vmatpush2.bf16.msra.mxu0 0
      %787 = vmatprep.subr.bf16.mxu0 0
      %788 = vmatpush2.bf16.msra.mxu0 0
      %789 = vmatprep.subr.bf16.mxu0 0
      %790 = vmatpush2.bf16.msra.mxu0 0
      %791 = vmatprep.mubr.bf16.mxu0 0
      %792 = vmatmul.mubr.bf16.gmra.mxu0 %v757
      %v793 = vpop.f32.mrf.mxu0
      %v794 = vadd.f32 %v473, %v793
      %v795 = vpop.f32.mrf.mxu0
      %v796 = vpop.f32.mrf.mxu0
      %v797 = vadd.f32 %v473, %v796
      %v798 = vpop.f32.mrf.mxu0
      %799 = vdwg.mxu0
      %v800 = vmax.f32 %v794, 0.0
      %v801 = vmax.f32 %v797, 0.0
      %v802 = vpack.c.bf16 %v801, %v800
      %s803 = scalar_lea.vmem [#allocation2], 24
      %804 = vst.msk [vmem:[%s803] sm:$0xf] %vm605, %v802
      %v806 = vunpack.c.h.b16 %v802
      %v807 = vpack.c.b16 %v806, %v806
      %s809 = scalar_lea.vmem [#allocation3], 24
      %810 = vst.msk [vmem:[%s809] sm:$0xf] %vm605, %v807
      %v811 = vunpack.c.l.b16 %v802
      %v812 = vpack.c.b16 %v811, %v811
      %v814 = vshrl.u32 %v812, 16
      %v816 = vrot.slane %v814, 4
      %v817 = vshll.u32 %v812, 16
      %v819 = vrot.slane %v817, 5
      %v820 = vor.u32 %v816, %v819
      %v821 = vrot.slane %v820, 4
      %v823 = vshll.u32 %v807, 16
      %v825 = vrot.slane %v823, 5
      %v826 = vsel %vm656, %v821, %v825
      %s828 = scalar_lea.vmem [#allocation4], 24
      %829 = vst.msk [vmem:[%s828] sm:$0xf] %vm605, %v826
      %v830 = vld [vmem:[#allocation2] sm:$0xf]
      %v831 = vld [vmem:[#allocation2 + $0x8] sm:$0xf]
      %v832 = vld [vmem:[#allocation2 + $0x10] sm:$0xf]
      %v833 = vld [vmem:[%s4] sm:$0xf]
      %v834 = vld [vmem:[%s4 + $0x4] sm:$0xf]
      %v835 = vld [vmem:[%s4 + $0x8] sm:$0xf]
      %v836 = vld [vmem:[%s4 + $0xc] sm:$0xf]
      %v837 = vld [vmem:[#allocation3] sm:$0xf]
      %v838 = vld [vmem:[#allocation3 + $0x8] sm:$0xf]
      %v839 = vld [vmem:[#allocation3 + $0x10] sm:$0xf]
      %s840 = scalar_lea.vmem %s4, 16
      %v841 = vld [vmem:[%s840] sm:$0xf]
      %v842 = vld [vmem:[%s840 + $0x4] sm:$0xf]
      %v843 = vld [vmem:[%s840 + $0x8] sm:$0xf]
      %v844 = vld [vmem:[%s840 + $0xc] sm:$0xf]
      %v848 = vunpack.c.l.b16 %v837
      %v849 = vunpack.c.l.b16 %v838
      %v850 = vunpack.c.l.b16 %v839
      %v851 = vpack.c.b16 %v849, %v848
      %v852 = vpack.c.b16 %v850, %v850
      %v857 = vunpack.c.l.b16 %v841
      %v858 = vunpack.c.l.b16 %v842
      %v859 = vunpack.c.l.b16 %v843
      %v860 = vunpack.c.l.b16 %v844
      %v861 = vpack.c.b16 %v858, %v857
      %v862 = vpack.c.b16 %v860, %v859
      %vm865 = vcmask 261120
      %v867 = vsel %vm865, %v851, 0
      %v870 = vsel %vm865, %v852, 0
      %872 = vmatprep.subr.bf16.mxu0 0
      %873 = vmatpush1.bf16.msra.mxu0 0
      %874 = vmatprep.subr.bf16.mxu0 0
      %875 = vmatpush1.bf16.msra.mxu0 0
      %876 = vmatprep.subr.bf16.mxu0 0
      %877 = vmatpush1.bf16.msra.mxu0 0
      %878 = vmatprep.subr.bf16.mxu0 0
      %879 = vmatpush1.bf16.msra.mxu0 0
      %880 = vmatprep.subr.bf16.mxu0 0
      %881 = vmatpush1.bf16.msra.mxu0 0
      %882 = vmatprep.subr.bf16.mxu0 0
      %883 = vmatpush1.bf16.msra.mxu0 0
      %884 = vmatprep.subr.bf16.mxu0 0
      %885 = vmatpush1.bf16.msra.mxu0 %v862
      %886 = vmatprep.subr.bf16.mxu0 0
      %887 = vmatpush1.bf16.msra.mxu0 %v861
      %888 = vmatprep.subr.bf16.mxu0 0
      %889 = vmatpush2.bf16.msra.mxu0 0
      %890 = vmatprep.subr.bf16.mxu0 0
      %891 = vmatpush2.bf16.msra.mxu0 0
      %892 = vmatprep.subr.bf16.mxu0 0
      %893 = vmatpush2.bf16.msra.mxu0 0
      %894 = vmatprep.subr.bf16.mxu0 0
      %895 = vmatpush2.bf16.msra.mxu0 0
      %896 = vmatprep.subr.bf16.mxu0 0
      %897 = vmatpush2.bf16.msra.mxu0 0
      %898 = vmatprep.subr.bf16.mxu0 0
      %899 = vmatpush2.bf16.msra.mxu0 0
      %900 = vmatprep.subr.bf16.mxu0 0
      %901 = vmatpush2.bf16.msra.mxu0 0
      %902 = vmatprep.subr.bf16.mxu0 0
      %903 = vmatpush2.bf16.msra.mxu0 0
      %904 = vmatprep.mubr.bf16.mxu0 0
      %905 = vmatmul.mubr.bf16.gmra.mxu0 %v867
      %v906 = vpop.f32.mrf.mxu0
      %v907 = vadd.f32 0.0, %v906
      %v908 = vpop.f32.mrf.mxu0
      %v909 = vpop.f32.mrf.mxu0
      %v910 = vadd.f32 0.0, %v909
      %v911 = vpop.f32.mrf.mxu0
      %912 = vmatprep.mubr.bf16.mxu0 0
      %913 = vmatmul.mubr.bf16.gmra.mxu0 %v870
      %v914 = vpop.f32.mrf.mxu0
      %v915 = vadd.f32 0.0, %v914
      %v916 = vpop.f32.mrf.mxu0
      %v917 = vpop.f32.mrf.mxu0
      %v918 = vpop.f32.mrf.mxu0
      %919 = vdwg.mxu0
      %v923 = vunpack.c.l.b16 %v830
      %v924 = vunpack.c.l.b16 %v831
      %v925 = vunpack.c.l.b16 %v832
      %v926 = vpack.c.b16 %v924, %v923
      %v927 = vpack.c.b16 %v925, %v925
      %v932 = vunpack.c.l.b16 %v833
      %v933 = vunpack.c.l.b16 %v834
      %v934 = vunpack.c.l.b16 %v835
      %v935 = vunpack.c.l.b16 %v836
      %v936 = vpack.c.b16 %v933, %v932
      %v937 = vpack.c.b16 %v935, %v934
      %v941 = vsel %vm865, %v926, 0
      %v944 = vsel %vm865, %v927, 0
      %946 = vmatprep.subr.bf16.mxu0 0
      %947 = vmatpush1.bf16.msra.mxu0 0
      %948 = vmatprep.subr.bf16.mxu0 0
      %949 = vmatpush1.bf16.msra.mxu0 0
      %950 = vmatprep.subr.bf16.mxu0 0
      %951 = vmatpush1.bf16.msra.mxu0 0
      %952 = vmatprep.subr.bf16.mxu0 0
      %953 = vmatpush1.bf16.msra.mxu0 0
      %954 = vmatprep.subr.bf16.mxu0 0
      %955 = vmatpush1.bf16.msra.mxu0 0
      %956 = vmatprep.subr.bf16.mxu0 0
      %957 = vmatpush1.bf16.msra.mxu0 0
      %958 = vmatprep.subr.bf16.mxu0 0
      %959 = vmatpush1.bf16.msra.mxu0 %v937
      %960 = vmatprep.subr.bf16.mxu0 0
      %961 = vmatpush1.bf16.msra.mxu0 %v936
      %962 = vmatprep.subr.bf16.mxu0 0
      %963 = vmatpush2.bf16.msra.mxu0 0
      %964 = vmatprep.subr.bf16.mxu0 0
      %965 = vmatpush2.bf16.msra.mxu0 0
      %966 = vmatprep.subr.bf16.mxu0 0
      %967 = vmatpush2.bf16.msra.mxu0 0
      %968 = vmatprep.subr.bf16.mxu0 0
      %969 = vmatpush2.bf16.msra.mxu0 0
      %970 = vmatprep.subr.bf16.mxu0 0
      %971 = vmatpush2.bf16.msra.mxu0 0
      %972 = vmatprep.subr.bf16.mxu0 0
      %973 = vmatpush2.bf16.msra.mxu0 0
      %974 = vmatprep.subr.bf16.mxu0 0
      %975 = vmatpush2.bf16.msra.mxu0 0
      %976 = vmatprep.subr.bf16.mxu0 0
      %977 = vmatpush2.bf16.msra.mxu0 0
      %978 = vmatprep.mubr.bf16.mxu0 0
      %979 = vmatmul.mubr.bf16.gmra.mxu0 %v941
      %v980 = vpop.f32.mrf.mxu0
      %v981 = vadd.f32 %v907, %v980
      %v982 = vpop.f32.mrf.mxu0
      %v983 = vpop.f32.mrf.mxu0
      %v984 = vadd.f32 %v910, %v983
      %v985 = vpop.f32.mrf.mxu0
      %986 = vmatprep.mubr.bf16.mxu0 0
      %987 = vmatmul.mubr.bf16.gmra.mxu0 %v944
      %v988 = vpop.f32.mrf.mxu0
      %v989 = vadd.f32 %v915, %v988
      %v990 = vpop.f32.mrf.mxu0
      %v991 = vpop.f32.mrf.mxu0
      %v992 = vpop.f32.mrf.mxu0
      %993 = vdwg.mxu0
      %v994 = vld [vmem:[#allocation4] sm:$0xf]
      %v995 = vld [vmem:[#allocation4 + $0x8] sm:$0xf]
      %v996 = vld [vmem:[#allocation4 + $0x10] sm:$0xf]
      %s997 = scalar_lea.vmem %s4, 32
      %v998 = vld [vmem:[%s997] sm:$0xf]
      %v999 = vld [vmem:[%s997 + $0x4] sm:$0xf]
      %v1000 = vld [vmem:[%s997 + $0x8] sm:$0xf]
      %v1001 = vld [vmem:[%s997 + $0xc] sm:$0xf]
      %v1005 = vunpack.c.l.b16 %v994
      %v1006 = vunpack.c.l.b16 %v995
      %v1007 = vunpack.c.l.b16 %v996
      %v1008 = vpack.c.b16 %v1006, %v1005
      %v1009 = vpack.c.b16 %v1007, %v1007
      %v1014 = vunpack.c.l.b16 %v998
      %v1015 = vunpack.c.l.b16 %v999
      %v1016 = vunpack.c.l.b16 %v1000
      %v1017 = vunpack.c.l.b16 %v1001
      %v1018 = vpack.c.b16 %v1015, %v1014
      %v1019 = vpack.c.b16 %v1017, %v1016
      %v1023 = vsel %vm865, %v1008, 0
      %v1026 = vsel %vm865, %v1009, 0
      %1028 = vmatprep.subr.bf16.mxu0 0
      %1029 = vmatpush1.bf16.msra.mxu0 0
      %1030 = vmatprep.subr.bf16.mxu0 0
      %1031 = vmatpush1.bf16.msra.mxu0 0
      %1032 = vmatprep.subr.bf16.mxu0 0
      %1033 = vmatpush1.bf16.msra.mxu0 0
      %1034 = vmatprep.subr.bf16.mxu0 0
      %1035 = vmatpush1.bf16.msra.mxu0 0
      %1036 = vmatprep.subr.bf16.mxu0 0
      %1037 = vmatpush1.bf16.msra.mxu0 0
      %1038 = vmatprep.subr.bf16.mxu0 0
      %1039 = vmatpush1.bf16.msra.mxu0 0
      %1040 = vmatprep.subr.bf16.mxu0 0
      %1041 = vmatpush1.bf16.msra.mxu0 %v1019
      %1042 = vmatprep.subr.bf16.mxu0 0
      %1043 = vmatpush1.bf16.msra.mxu0 %v1018
      %1044 = vmatprep.subr.bf16.mxu0 0
      %1045 = vmatpush2.bf16.msra.mxu0 0
      %1046 = vmatprep.subr.bf16.mxu0 0
      %1047 = vmatpush2.bf16.msra.mxu0 0
      %1048 = vmatprep.subr.bf16.mxu0 0
      %1049 = vmatpush2.bf16.msra.mxu0 0
      %1050 = vmatprep.subr.bf16.mxu0 0
      %1051 = vmatpush2.bf16.msra.mxu0 0
      %1052 = vmatprep.subr.bf16.mxu0 0
      %1053 = vmatpush2.bf16.msra.mxu0 0
      %1054 = vmatprep.subr.bf16.mxu0 0
      %1055 = vmatpush2.bf16.msra.mxu0 0
      %1056 = vmatprep.subr.bf16.mxu0 0
      %1057 = vmatpush2.bf16.msra.mxu0 0
      %1058 = vmatprep.subr.bf16.mxu0 0
      %1059 = vmatpush2.bf16.msra.mxu0 0
      %1060 = vmatprep.mubr.bf16.mxu0 0
      %1061 = vmatmul.mubr.bf16.gmra.mxu0 %v1023
      %v1062 = vpop.f32.mrf.mxu0
      %v1063 = vadd.f32 0.0, %v1062
      %v1064 = vpop.f32.mrf.mxu0
      %v1065 = vpop.f32.mrf.mxu0
      %v1066 = vadd.f32 0.0, %v1065
      %v1067 = vpop.f32.mrf.mxu0
      %1068 = vmatprep.mubr.bf16.mxu0 0
      %1069 = vmatmul.mubr.bf16.gmra.mxu0 %v1026
      %v1070 = vpop.f32.mrf.mxu0
      %v1071 = vadd.f32 0.0, %v1070
      %v1072 = vpop.f32.mrf.mxu0
      %v1073 = vpop.f32.mrf.mxu0
      %v1074 = vpop.f32.mrf.mxu0
      %1075 = vdwg.mxu0
      %v1076 = vadd.f32 %v981, %v1063
      %v1077 = vadd.f32 %v984, %v1066
      %v1078 = vadd.f32 %v989, %v1071
      %s1079 = scalar_lea.vmem [#allocation2], 4
      %v1080 = vld [vmem:[%s1079] sm:$0xf]
      %v1081 = vld [vmem:[%s1079 + $0x8] sm:$0xf]
      %v1082 = vld [vmem:[%s1079 + $0x10] sm:$0xf]
      %s1083 = scalar_lea.vmem %s4, 48
      %v1084 = vld [vmem:[%s1083] sm:$0xf]
      %v1085 = vld [vmem:[%s1083 + $0x4] sm:$0xf]
      %v1086 = vld [vmem:[%s1083 + $0x8] sm:$0xf]
      %v1087 = vld [vmem:[%s1083 + $0xc] sm:$0xf]
      %v1091 = vunpack.c.l.b16 %v1080
      %v1092 = vunpack.c.l.b16 %v1081
      %v1093 = vunpack.c.l.b16 %v1082
      %v1094 = vpack.c.b16 %v1092, %v1091
      %v1095 = vpack.c.b16 %v1093, %v1093
      %v1100 = vunpack.c.l.b16 %v1084
      %v1101 = vunpack.c.l.b16 %v1085
      %v1102 = vunpack.c.l.b16 %v1086
      %v1103 = vunpack.c.l.b16 %v1087
      %v1104 = vpack.c.b16 %v1101, %v1100
      %v1105 = vpack.c.b16 %v1103, %v1102
      %v1109 = vsel %vm865, %v1094, 0
      %v1112 = vsel %vm865, %v1095, 0
      %1114 = vmatprep.subr.bf16.mxu0 0
      %1115 = vmatpush1.bf16.msra.mxu0 0
      %1116 = vmatprep.subr.bf16.mxu0 0
      %1117 = vmatpush1.bf16.msra.mxu0 0
      %1118 = vmatprep.subr.bf16.mxu0 0
      %1119 = vmatpush1.bf16.msra.mxu0 0
      %1120 = vmatprep.subr.bf16.mxu0 0
      %1121 = vmatpush1.bf16.msra.mxu0 0
      %1122 = vmatprep.subr.bf16.mxu0 0
      %1123 = vmatpush1.bf16.msra.mxu0 0
      %1124 = vmatprep.subr.bf16.mxu0 0
      %1125 = vmatpush1.bf16.msra.mxu0 0
      %1126 = vmatprep.subr.bf16.mxu0 0
      %1127 = vmatpush1.bf16.msra.mxu0 %v1105
      %1128 = vmatprep.subr.bf16.mxu0 0
      %1129 = vmatpush1.bf16.msra.mxu0 %v1104
      %1130 = vmatprep.subr.bf16.mxu0 0
      %1131 = vmatpush2.bf16.msra.mxu0 0
      %1132 = vmatprep.subr.bf16.mxu0 0
      %1133 = vmatpush2.bf16.msra.mxu0 0
      %1134 = vmatprep.subr.bf16.mxu0 0
      %1135 = vmatpush2.bf16.msra.mxu0 0
      %1136 = vmatprep.subr.bf16.mxu0 0
      %1137 = vmatpush2.bf16.msra.mxu0 0
      %1138 = vmatprep.subr.bf16.mxu0 0
      %1139 = vmatpush2.bf16.msra.mxu0 0
      %1140 = vmatprep.subr.bf16.mxu0 0
      %1141 = vmatpush2.bf16.msra.mxu0 0
      %1142 = vmatprep.subr.bf16.mxu0 0
      %1143 = vmatpush2.bf16.msra.mxu0 0
      %1144 = vmatprep.subr.bf16.mxu0 0
      %1145 = vmatpush2.bf16.msra.mxu0 0
      %1146 = vmatprep.mubr.bf16.mxu0 0
      %1147 = vmatmul.mubr.bf16.gmra.mxu0 %v1109
      %v1148 = vpop.f32.mrf.mxu0
      %v1149 = vadd.f32 0.0, %v1148
      %v1150 = vpop.f32.mrf.mxu0
      %v1151 = vpop.f32.mrf.mxu0
      %v1152 = vadd.f32 0.0, %v1151
      %v1153 = vpop.f32.mrf.mxu0
      %1154 = vmatprep.mubr.bf16.mxu0 0
      %1155 = vmatmul.mubr.bf16.gmra.mxu0 %v1112
      %v1156 = vpop.f32.mrf.mxu0
      %v1157 = vadd.f32 0.0, %v1156
      %v1158 = vpop.f32.mrf.mxu0
      %v1159 = vpop.f32.mrf.mxu0
      %v1160 = vpop.f32.mrf.mxu0
      %1161 = vdwg.mxu0
      %v1162 = vadd.f32 %v1076, %v1149
      %v1163 = vadd.f32 %v1077, %v1152
      %v1164 = vadd.f32 %v1078, %v1157
      %s1165 = scalar_lea.vmem [#allocation3], 4
      %v1166 = vld [vmem:[%s1165] sm:$0xf]
      %v1167 = vld [vmem:[%s1165 + $0x8] sm:$0xf]
      %v1168 = vld [vmem:[%s1165 + $0x10] sm:$0xf]
      %s1169 = scalar_lea.vmem %s4, 64
      %v1170 = vld [vmem:[%s1169] sm:$0xf]
      %v1171 = vld [vmem:[%s1169 + $0x4] sm:$0xf]
      %v1172 = vld [vmem:[%s1169 + $0x8] sm:$0xf]
      %v1173 = vld [vmem:[%s1169 + $0xc] sm:$0xf]
      %v1177 = vunpack.c.l.b16 %v1166
      %v1178 = vunpack.c.l.b16 %v1167
      %v1179 = vunpack.c.l.b16 %v1168
      %v1180 = vpack.c.b16 %v1178, %v1177
      %v1181 = vpack.c.b16 %v1179, %v1179
      %v1186 = vunpack.c.l.b16 %v1170
      %v1187 = vunpack.c.l.b16 %v1171
      %v1188 = vunpack.c.l.b16 %v1172
      %v1189 = vunpack.c.l.b16 %v1173
      %v1190 = vpack.c.b16 %v1187, %v1186
      %v1191 = vpack.c.b16 %v1189, %v1188
      %v1195 = vsel %vm865, %v1180, 0
      %v1198 = vsel %vm865, %v1181, 0
      %1200 = vmatprep.subr.bf16.mxu0 0
      %1201 = vmatpush1.bf16.msra.mxu0 0
      %1202 = vmatprep.subr.bf16.mxu0 0
      %1203 = vmatpush1.bf16.msra.mxu0 0
      %1204 = vmatprep.subr.bf16.mxu0 0
      %1205 = vmatpush1.bf16.msra.mxu0 0
      %1206 = vmatprep.subr.bf16.mxu0 0
      %1207 = vmatpush1.bf16.msra.mxu0 0
      %1208 = vmatprep.subr.bf16.mxu0 0
      %1209 = vmatpush1.bf16.msra.mxu0 0
      %1210 = vmatprep.subr.bf16.mxu0 0
      %1211 = vmatpush1.bf16.msra.mxu0 0
      %1212 = vmatprep.subr.bf16.mxu0 0
      %1213 = vmatpush1.bf16.msra.mxu0 %v1191
      %1214 = vmatprep.subr.bf16.mxu0 0
      %1215 = vmatpush1.bf16.msra.mxu0 %v1190
      %1216 = vmatprep.subr.bf16.mxu0 0
      %1217 = vmatpush2.bf16.msra.mxu0 0
      %1218 = vmatprep.subr.bf16.mxu0 0
      %1219 = vmatpush2.bf16.msra.mxu0 0
      %1220 = vmatprep.subr.bf16.mxu0 0
      %1221 = vmatpush2.bf16.msra.mxu0 0
      %1222 = vmatprep.subr.bf16.mxu0 0
      %1223 = vmatpush2.bf16.msra.mxu0 0
      %1224 = vmatprep.subr.bf16.mxu0 0
      %1225 = vmatpush2.bf16.msra.mxu0 0
      %1226 = vmatprep.subr.bf16.mxu0 0
      %1227 = vmatpush2.bf16.msra.mxu0 0
      %1228 = vmatprep.subr.bf16.mxu0 0
      %1229 = vmatpush2.bf16.msra.mxu0 0
      %1230 = vmatprep.subr.bf16.mxu0 0
      %1231 = vmatpush2.bf16.msra.mxu0 0
      %1232 = vmatprep.mubr.bf16.mxu0 0
      %1233 = vmatmul.mubr.bf16.gmra.mxu0 %v1195
      %v1234 = vpop.f32.mrf.mxu0
      %v1235 = vadd.f32 0.0, %v1234
      %v1236 = vpop.f32.mrf.mxu0
      %v1237 = vpop.f32.mrf.mxu0
      %v1238 = vadd.f32 0.0, %v1237
      %v1239 = vpop.f32.mrf.mxu0
      %1240 = vmatprep.mubr.bf16.mxu0 0
      %1241 = vmatmul.mubr.bf16.gmra.mxu0 %v1198
      %v1242 = vpop.f32.mrf.mxu0
      %v1243 = vadd.f32 0.0, %v1242
      %v1244 = vpop.f32.mrf.mxu0
      %v1245 = vpop.f32.mrf.mxu0
      %v1246 = vpop.f32.mrf.mxu0
      %1247 = vdwg.mxu0
      %v1248 = vadd.f32 %v1162, %v1235
      %v1249 = vadd.f32 %v1163, %v1238
      %v1250 = vadd.f32 %v1164, %v1243
      %s1251 = scalar_lea.vmem [#allocation4], 4
      %v1252 = vld [vmem:[%s1251] sm:$0xf]
      %v1253 = vld [vmem:[%s1251 + $0x8] sm:$0xf]
      %v1254 = vld [vmem:[%s1251 + $0x10] sm:$0xf]
      %s1255 = scalar_lea.vmem %s4, 80
      %v1256 = vld [vmem:[%s1255] sm:$0xf]
      %v1257 = vld [vmem:[%s1255 + $0x4] sm:$0xf]
      %v1258 = vld [vmem:[%s1255 + $0x8] sm:$0xf]
      %v1259 = vld [vmem:[%s1255 + $0xc] sm:$0xf]
      %v1263 = vunpack.c.l.b16 %v1252
      %v1264 = vunpack.c.l.b16 %v1253
      %v1265 = vunpack.c.l.b16 %v1254
      %v1266 = vpack.c.b16 %v1264, %v1263
      %v1267 = vpack.c.b16 %v1265, %v1265
      %v1272 = vunpack.c.l.b16 %v1256
      %v1273 = vunpack.c.l.b16 %v1257
      %v1274 = vunpack.c.l.b16 %v1258
      %v1275 = vunpack.c.l.b16 %v1259
      %v1276 = vpack.c.b16 %v1273, %v1272
      %v1277 = vpack.c.b16 %v1275, %v1274
      %v1281 = vsel %vm865, %v1266, 0
      %v1284 = vsel %vm865, %v1267, 0
      %1286 = vmatprep.subr.bf16.mxu0 0
      %1287 = vmatpush1.bf16.msra.mxu0 0
      %1288 = vmatprep.subr.bf16.mxu0 0
      %1289 = vmatpush1.bf16.msra.mxu0 0
      %1290 = vmatprep.subr.bf16.mxu0 0
      %1291 = vmatpush1.bf16.msra.mxu0 0
      %1292 = vmatprep.subr.bf16.mxu0 0
      %1293 = vmatpush1.bf16.msra.mxu0 0
      %1294 = vmatprep.subr.bf16.mxu0 0
      %1295 = vmatpush1.bf16.msra.mxu0 0
      %1296 = vmatprep.subr.bf16.mxu0 0
      %1297 = vmatpush1.bf16.msra.mxu0 0
      %1298 = vmatprep.subr.bf16.mxu0 0
      %1299 = vmatpush1.bf16.msra.mxu0 %v1277
      %1300 = vmatprep.subr.bf16.mxu0 0
      %1301 = vmatpush1.bf16.msra.mxu0 %v1276
      %1302 = vmatprep.subr.bf16.mxu0 0
      %1303 = vmatpush2.bf16.msra.mxu0 0
      %1304 = vmatprep.subr.bf16.mxu0 0
      %1305 = vmatpush2.bf16.msra.mxu0 0
      %1306 = vmatprep.subr.bf16.mxu0 0
      %1307 = vmatpush2.bf16.msra.mxu0 0
      %1308 = vmatprep.subr.bf16.mxu0 0
      %1309 = vmatpush2.bf16.msra.mxu0 0
      %1310 = vmatprep.subr.bf16.mxu0 0
      %1311 = vmatpush2.bf16.msra.mxu0 0
      %1312 = vmatprep.subr.bf16.mxu0 0
      %1313 = vmatpush2.bf16.msra.mxu0 0
      %1314 = vmatprep.subr.bf16.mxu0 0
      %1315 = vmatpush2.bf16.msra.mxu0 0
      %1316 = vmatprep.subr.bf16.mxu0 0
      %1317 = vmatpush2.bf16.msra.mxu0 0
      %1318 = vmatprep.mubr.bf16.mxu0 0
      %1319 = vmatmul.mubr.bf16.gmra.mxu0 %v1281
      %v1320 = vpop.f32.mrf.mxu0
      %v1321 = vadd.f32 0.0, %v1320
      %v1322 = vpop.f32.mrf.mxu0
      %v1323 = vpop.f32.mrf.mxu0
      %v1324 = vadd.f32 0.0, %v1323
      %v1325 = vpop.f32.mrf.mxu0
      %1326 = vmatprep.mubr.bf16.mxu0 0
      %1327 = vmatmul.mubr.bf16.gmra.mxu0 %v1284
      %v1328 = vpop.f32.mrf.mxu0
      %v1329 = vadd.f32 0.0, %v1328
      %v1330 = vpop.f32.mrf.mxu0
      %v1331 = vpop.f32.mrf.mxu0
      %v1332 = vpop.f32.mrf.mxu0
      %1333 = vdwg.mxu0
      %v1334 = vadd.f32 %v1248, %v1321
      %v1335 = vadd.f32 %v1249, %v1324
      %v1336 = vadd.f32 %v1250, %v1329
      %s1337 = scalar_lea.vmem [#allocation2], 8
      %v1338 = vld [vmem:[%s1337] sm:$0xf]
      %v1339 = vld [vmem:[%s1337 + $0x8] sm:$0xf]
      %v1340 = vld [vmem:[%s1337 + $0x10] sm:$0xf]
      %s1341 = scalar_lea.vmem %s4, 96
      %v1342 = vld [vmem:[%s1341] sm:$0xf]
      %v1343 = vld [vmem:[%s1341 + $0x4] sm:$0xf]
      %v1344 = vld [vmem:[%s1341 + $0x8] sm:$0xf]
      %v1345 = vld [vmem:[%s1341 + $0xc] sm:$0xf]
      %v1349 = vunpack.c.l.b16 %v1338
      %v1350 = vunpack.c.l.b16 %v1339
      %v1351 = vunpack.c.l.b16 %v1340
      %v1352 = vpack.c.b16 %v1350, %v1349
      %v1353 = vpack.c.b16 %v1351, %v1351
      %v1358 = vunpack.c.l.b16 %v1342
      %v1359 = vunpack.c.l.b16 %v1343
      %v1360 = vunpack.c.l.b16 %v1344
      %v1361 = vunpack.c.l.b16 %v1345
      %v1362 = vpack.c.b16 %v1359, %v1358
      %v1363 = vpack.c.b16 %v1361, %v1360
      %v1367 = vsel %vm865, %v1352, 0
      %v1370 = vsel %vm865, %v1353, 0
      %1372 = vmatprep.subr.bf16.mxu0 0
      %1373 = vmatpush1.bf16.msra.mxu0 0
      %1374 = vmatprep.subr.bf16.mxu0 0
      %1375 = vmatpush1.bf16.msra.mxu0 0
      %1376 = vmatprep.subr.bf16.mxu0 0
      %1377 = vmatpush1.bf16.msra.mxu0 0
      %1378 = vmatprep.subr.bf16.mxu0 0
      %1379 = vmatpush1.bf16.msra.mxu0 0
      %1380 = vmatprep.subr.bf16.mxu0 0
      %1381 = vmatpush1.bf16.msra.mxu0 0
      %1382 = vmatprep.subr.bf16.mxu0 0
      %1383 = vmatpush1.bf16.msra.mxu0 0
      %1384 = vmatprep.subr.bf16.mxu0 0
      %1385 = vmatpush1.bf16.msra.mxu0 %v1363
      %1386 = vmatprep.subr.bf16.mxu0 0
      %1387 = vmatpush1.bf16.msra.mxu0 %v1362
      %1388 = vmatprep.subr.bf16.mxu0 0
      %1389 = vmatpush2.bf16.msra.mxu0 0
      %1390 = vmatprep.subr.bf16.mxu0 0
      %1391 = vmatpush2.bf16.msra.mxu0 0
      %1392 = vmatprep.subr.bf16.mxu0 0
      %1393 = vmatpush2.bf16.msra.mxu0 0
      %1394 = vmatprep.subr.bf16.mxu0 0
      %1395 = vmatpush2.bf16.msra.mxu0 0
      %1396 = vmatprep.subr.bf16.mxu0 0
      %1397 = vmatpush2.bf16.msra.mxu0 0
      %1398 = vmatprep.subr.bf16.mxu0 0
      %1399 = vmatpush2.bf16.msra.mxu0 0
      %1400 = vmatprep.subr.bf16.mxu0 0
      %1401 = vmatpush2.bf16.msra.mxu0 0
      %1402 = vmatprep.subr.bf16.mxu0 0
      %1403 = vmatpush2.bf16.msra.mxu0 0
      %1404 = vmatprep.mubr.bf16.mxu0 0
      %1405 = vmatmul.mubr.bf16.gmra.mxu0 %v1367
      %v1406 = vpop.f32.mrf.mxu0
      %v1407 = vadd.f32 0.0, %v1406
      %v1408 = vpop.f32.mrf.mxu0
      %v1409 = vpop.f32.mrf.mxu0
      %v1410 = vadd.f32 0.0, %v1409
      %v1411 = vpop.f32.mrf.mxu0
      %1412 = vmatprep.mubr.bf16.mxu0 0
      %1413 = vmatmul.mubr.bf16.gmra.mxu0 %v1370
      %v1414 = vpop.f32.mrf.mxu0
      %v1415 = vadd.f32 0.0, %v1414
      %v1416 = vpop.f32.mrf.mxu0
      %v1417 = vpop.f32.mrf.mxu0
      %v1418 = vpop.f32.mrf.mxu0
      %1419 = vdwg.mxu0
      %v1420 = vadd.f32 %v1334, %v1407
      %v1421 = vadd.f32 %v1335, %v1410
      %v1422 = vadd.f32 %v1336, %v1415
      %s1423 = scalar_lea.vmem [#allocation3], 8
      %v1424 = vld [vmem:[%s1423] sm:$0xf]
      %v1425 = vld [vmem:[%s1423 + $0x8] sm:$0xf]
      %v1426 = vld [vmem:[%s1423 + $0x10] sm:$0xf]
      %s1427 = scalar_lea.vmem %s4, 112
      %v1428 = vld [vmem:[%s1427] sm:$0xf]
      %v1429 = vld [vmem:[%s1427 + $0x4] sm:$0xf]
      %v1430 = vld [vmem:[%s1427 + $0x8] sm:$0xf]
      %v1431 = vld [vmem:[%s1427 + $0xc] sm:$0xf]
      %v1435 = vunpack.c.l.b16 %v1424
      %v1436 = vunpack.c.l.b16 %v1425
      %v1437 = vunpack.c.l.b16 %v1426
      %v1438 = vpack.c.b16 %v1436, %v1435
      %v1439 = vpack.c.b16 %v1437, %v1437
      %v1444 = vunpack.c.l.b16 %v1428
      %v1445 = vunpack.c.l.b16 %v1429
      %v1446 = vunpack.c.l.b16 %v1430
      %v1447 = vunpack.c.l.b16 %v1431
      %v1448 = vpack.c.b16 %v1445, %v1444
      %v1449 = vpack.c.b16 %v1447, %v1446
      %v1453 = vsel %vm865, %v1438, 0
      %v1456 = vsel %vm865, %v1439, 0
      %1458 = vmatprep.subr.bf16.mxu0 0
      %1459 = vmatpush1.bf16.msra.mxu0 0
      %1460 = vmatprep.subr.bf16.mxu0 0
      %1461 = vmatpush1.bf16.msra.mxu0 0
      %1462 = vmatprep.subr.bf16.mxu0 0
      %1463 = vmatpush1.bf16.msra.mxu0 0
      %1464 = vmatprep.subr.bf16.mxu0 0
      %1465 = vmatpush1.bf16.msra.mxu0 0
      %1466 = vmatprep.subr.bf16.mxu0 0
      %1467 = vmatpush1.bf16.msra.mxu0 0
      %1468 = vmatprep.subr.bf16.mxu0 0
      %1469 = vmatpush1.bf16.msra.mxu0 0
      %1470 = vmatprep.subr.bf16.mxu0 0
      %1471 = vmatpush1.bf16.msra.mxu0 %v1449
      %1472 = vmatprep.subr.bf16.mxu0 0
      %1473 = vmatpush1.bf16.msra.mxu0 %v1448
      %1474 = vmatprep.subr.bf16.mxu0 0
      %1475 = vmatpush2.bf16.msra.mxu0 0
      %1476 = vmatprep.subr.bf16.mxu0 0
      %1477 = vmatpush2.bf16.msra.mxu0 0
      %1478 = vmatprep.subr.bf16.mxu0 0
      %1479 = vmatpush2.bf16.msra.mxu0 0
      %1480 = vmatprep.subr.bf16.mxu0 0
      %1481 = vmatpush2.bf16.msra.mxu0 0
      %1482 = vmatprep.subr.bf16.mxu0 0
      %1483 = vmatpush2.bf16.msra.mxu0 0
      %1484 = vmatprep.subr.bf16.mxu0 0
      %1485 = vmatpush2.bf16.msra.mxu0 0
      %1486 = vmatprep.subr.bf16.mxu0 0
      %1487 = vmatpush2.bf16.msra.mxu0 0
      %1488 = vmatprep.subr.bf16.mxu0 0
      %1489 = vmatpush2.bf16.msra.mxu0 0
      %1490 = vmatprep.mubr.bf16.mxu0 0
      %1491 = vmatmul.mubr.bf16.gmra.mxu0 %v1453
      %v1492 = vpop.f32.mrf.mxu0
      %v1493 = vadd.f32 0.0, %v1492
      %v1494 = vpop.f32.mrf.mxu0
      %v1495 = vpop.f32.mrf.mxu0
      %v1496 = vadd.f32 0.0, %v1495
      %v1497 = vpop.f32.mrf.mxu0
      %1498 = vmatprep.mubr.bf16.mxu0 0
      %1499 = vmatmul.mubr.bf16.gmra.mxu0 %v1456
      %v1500 = vpop.f32.mrf.mxu0
      %v1501 = vadd.f32 0.0, %v1500
      %v1502 = vpop.f32.mrf.mxu0
      %v1503 = vpop.f32.mrf.mxu0
      %v1504 = vpop.f32.mrf.mxu0
      %1505 = vdwg.mxu0
      %v1506 = vadd.f32 %v1420, %v1493
      %v1507 = vadd.f32 %v1421, %v1496
      %v1508 = vadd.f32 %v1422, %v1501
      %s1509 = scalar_lea.vmem [#allocation4], 8
      %v1510 = vld [vmem:[%s1509] sm:$0xf]
      %v1511 = vld [vmem:[%s1509 + $0x8] sm:$0xf]
      %v1512 = vld [vmem:[%s1509 + $0x10] sm:$0xf]
      %s1513 = scalar_lea.vmem %s4, 128
      %v1514 = vld [vmem:[%s1513] sm:$0xf]
      %v1515 = vld [vmem:[%s1513 + $0x4] sm:$0xf]
      %v1516 = vld [vmem:[%s1513 + $0x8] sm:$0xf]
      %v1517 = vld [vmem:[%s1513 + $0xc] sm:$0xf]
      %v1521 = vunpack.c.l.b16 %v1510
      %v1522 = vunpack.c.l.b16 %v1511
      %v1523 = vunpack.c.l.b16 %v1512
      %v1524 = vpack.c.b16 %v1522, %v1521
      %v1525 = vpack.c.b16 %v1523, %v1523
      %v1530 = vunpack.c.l.b16 %v1514
      %v1531 = vunpack.c.l.b16 %v1515
      %v1532 = vunpack.c.l.b16 %v1516
      %v1533 = vunpack.c.l.b16 %v1517
      %v1534 = vpack.c.b16 %v1531, %v1530
      %v1535 = vpack.c.b16 %v1533, %v1532
      %v1539 = vsel %vm865, %v1524, 0
      %v1542 = vsel %vm865, %v1525, 0
      %1544 = vmatprep.subr.bf16.mxu0 0
      %1545 = vmatpush1.bf16.msra.mxu0 0
      %1546 = vmatprep.subr.bf16.mxu0 0
      %1547 = vmatpush1.bf16.msra.mxu0 0
      %1548 = vmatprep.subr.bf16.mxu0 0
      %1549 = vmatpush1.bf16.msra.mxu0 0
      %1550 = vmatprep.subr.bf16.mxu0 0
      %1551 = vmatpush1.bf16.msra.mxu0 0
      %1552 = vmatprep.subr.bf16.mxu0 0
      %1553 = vmatpush1.bf16.msra.mxu0 0
      %1554 = vmatprep.subr.bf16.mxu0 0
      %1555 = vmatpush1.bf16.msra.mxu0 0
      %1556 = vmatprep.subr.bf16.mxu0 0
      %1557 = vmatpush1.bf16.msra.mxu0 %v1535
      %1558 = vmatprep.subr.bf16.mxu0 0
      %1559 = vmatpush1.bf16.msra.mxu0 %v1534
      %1560 = vmatprep.subr.bf16.mxu0 0
      %1561 = vmatpush2.bf16.msra.mxu0 0
      %1562 = vmatprep.subr.bf16.mxu0 0
      %1563 = vmatpush2.bf16.msra.mxu0 0
      %1564 = vmatprep.subr.bf16.mxu0 0
      %1565 = vmatpush2.bf16.msra.mxu0 0
      %1566 = vmatprep.subr.bf16.mxu0 0
      %1567 = vmatpush2.bf16.msra.mxu0 0
      %1568 = vmatprep.subr.bf16.mxu0 0
      %1569 = vmatpush2.bf16.msra.mxu0 0
      %1570 = vmatprep.subr.bf16.mxu0 0
      %1571 = vmatpush2.bf16.msra.mxu0 0
      %1572 = vmatprep.subr.bf16.mxu0 0
      %1573 = vmatpush2.bf16.msra.mxu0 0
      %1574 = vmatprep.subr.bf16.mxu0 0
      %1575 = vmatpush2.bf16.msra.mxu0 0
      %1576 = vmatprep.mubr.bf16.mxu0 0
      %1577 = vmatmul.mubr.bf16.gmra.mxu0 %v1539
      %v1578 = vpop.f32.mrf.mxu0
      %v1579 = vadd.f32 0.0, %v1578
      %v1580 = vpop.f32.mrf.mxu0
      %v1581 = vpop.f32.mrf.mxu0
      %v1582 = vadd.f32 0.0, %v1581
      %v1583 = vpop.f32.mrf.mxu0
      %1584 = vmatprep.mubr.bf16.mxu0 0
      %1585 = vmatmul.mubr.bf16.gmra.mxu0 %v1542
      %v1586 = vpop.f32.mrf.mxu0
      %v1587 = vadd.f32 0.0, %v1586
      %v1588 = vpop.f32.mrf.mxu0
      %v1589 = vpop.f32.mrf.mxu0
      %v1590 = vpop.f32.mrf.mxu0
      %1591 = vdwg.mxu0
      %v1592 = vadd.f32 %v1506, %v1579
      %v1593 = vadd.f32 %v1507, %v1582
      %v1594 = vadd.f32 %v1508, %v1587
      %v1595 = vld [vmem:[%s5] sm:$0x1]
      %v1597 = vlaneseq
      %v1598 = vshrl.u32 %v1597, 7
      %v1599 = vsub.s32 0, %v1598
      %v1600 = vrot.slane %v1595, %v1599
      %v1602 = vadd.f32 %v1592, %v1600
      %v1603 = vadd.f32 %v1593, %v1600
      %v1604 = vadd.f32 %v1594, %v1600
      %v1605 = vmax.f32 %v1602, 0.0
      %v1606 = vmax.f32 %v1603, 0.0
      %v1607 = vmax.f32 %v1604, 0.0
      %v1608 = vpack.c.bf16 %v1606, %v1605
      %v1609 = vpack.c.bf16 %v1607, %v1607
      %v1612 = vunpack.c.l.b16 %v1608
      %v1613 = vunpack.c.h.b16 %v1608
      %v1614 = vunpack.c.l.b16 %v1609
      %v1615 = vld [vmem:[%s6] sm:$0xf]
      %v1616 = vld [vmem:[%s6 + $0x4] sm:$0xf]
      %v1617 = vld [vmem:[%s6 + $0x8] sm:$0xf]
      %v1618 = vld [vmem:[%s6 + $0xc] sm:$0xf]
      %s1619 = scalar_lea.vmem %s6, 16
      %v1620 = vld [vmem:[%s1619] sm:$0xf]
      %v1621 = vld [vmem:[%s1619 + $0x4] sm:$0xf]
      %v1622 = vld [vmem:[%s1619 + $0x8] sm:$0xf]
      %v1623 = vld [vmem:[%s1619 + $0xc] sm:$0xf]
      %v1624 = vpack.c.b16 %v1612, %v1612
      %v1625 = vpack.c.b16 %v1613, %v1613
      %v1626 = vpack.c.b16 %v1614, %v1614
      %v1627 = vunpack.c.l.b16 %v1624
      %v1628 = vunpack.c.l.b16 %v1625
      %v1629 = vunpack.c.l.b16 %v1626
      %v1630 = vrot.slane %v1627, 1
      %vm1631 = vcmask 1041409
      %v1632 = vsel %vm1631, %v1628, %v1630
      %v1633 = vrot.slane %v1629, 7
      %vm1634 = vcmask 1042434
      %v1635 = vsel %vm1634, %v1633, %v1632
      %v1636 = vpack.c.b16 %v1635, %v1635
      %v1641 = vunpack.c.l.b16 %v1620
      %v1642 = vunpack.c.l.b16 %v1621
      %v1643 = vunpack.c.l.b16 %v1622
      %v1644 = vunpack.c.l.b16 %v1623
      %v1645 = vpack.c.b16 %v1642, %v1641
      %v1646 = vpack.c.b16 %v1644, %v1643
      %v1650 = vsel %vm865, %v1636, 0
      %1652 = vmatprep.subr.bf16.mxu0 0
      %1653 = vmatpush1.bf16.msra.mxu0 0
      %1654 = vmatprep.subr.bf16.mxu0 0
      %1655 = vmatpush1.bf16.msra.mxu0 0
      %1656 = vmatprep.subr.bf16.mxu0 0
      %1657 = vmatpush1.bf16.msra.mxu0 0
      %1658 = vmatprep.subr.bf16.mxu0 0
      %1659 = vmatpush1.bf16.msra.mxu0 0
      %1660 = vmatprep.subr.bf16.mxu0 0
      %1661 = vmatpush1.bf16.msra.mxu0 0
      %1662 = vmatprep.subr.bf16.mxu0 0
      %1663 = vmatpush1.bf16.msra.mxu0 0
      %1664 = vmatprep.subr.bf16.mxu0 0
      %1665 = vmatpush1.bf16.msra.mxu0 %v1646
      %1666 = vmatprep.subr.bf16.mxu0 0
      %1667 = vmatpush1.bf16.msra.mxu0 %v1645
      %1668 = vmatprep.subr.bf16.mxu0 0
      %1669 = vmatpush2.bf16.msra.mxu0 0
      %1670 = vmatprep.subr.bf16.mxu0 0
      %1671 = vmatpush2.bf16.msra.mxu0 0
      %1672 = vmatprep.subr.bf16.mxu0 0
      %1673 = vmatpush2.bf16.msra.mxu0 0
      %1674 = vmatprep.subr.bf16.mxu0 0
      %1675 = vmatpush2.bf16.msra.mxu0 0
      %1676 = vmatprep.subr.bf16.mxu0 0
      %1677 = vmatpush2.bf16.msra.mxu0 0
      %1678 = vmatprep.subr.bf16.mxu0 0
      %1679 = vmatpush2.bf16.msra.mxu0 0
      %1680 = vmatprep.subr.bf16.mxu0 0
      %1681 = vmatpush2.bf16.msra.mxu0 0
      %1682 = vmatprep.subr.bf16.mxu0 0
      %1683 = vmatpush2.bf16.msra.mxu0 0
      %1684 = vmatprep.mubr.bf16.mxu0 0
      %1685 = vmatmul.mubr.bf16.gmra.mxu0 %v1650
      %v1686 = vpop.f32.mrf.mxu0
      %v1687 = vadd.f32 0.0, %v1686
      %v1688 = vpop.f32.mrf.mxu0
      %v1689 = vpop.f32.mrf.mxu0
      %v1690 = vpop.f32.mrf.mxu0
      %1691 = vdwg.mxu0
      %v1692 = vrot.slane %v1628, 7
      %v1693 = vsel %vm1631, %v1692, %v1627
      %v1694 = vrot.slane %v1629, 6
      %v1695 = vsel %vm1634, %v1694, %v1693
      %v1696 = vpack.c.b16 %v1695, %v1695
      %v1701 = vunpack.c.l.b16 %v1615
      %v1702 = vunpack.c.l.b16 %v1616
      %v1703 = vunpack.c.l.b16 %v1617
      %v1704 = vunpack.c.l.b16 %v1618
      %v1705 = vpack.c.b16 %v1702, %v1701
      %v1706 = vpack.c.b16 %v1704, %v1703
      %v1710 = vsel %vm865, %v1696, 0
      %1712 = vmatprep.subr.bf16.mxu0 0
      %1713 = vmatpush1.bf16.msra.mxu0 0
      %1714 = vmatprep.subr.bf16.mxu0 0
      %1715 = vmatpush1.bf16.msra.mxu0 0
      %1716 = vmatprep.subr.bf16.mxu0 0
      %1717 = vmatpush1.bf16.msra.mxu0 0
      %1718 = vmatprep.subr.bf16.mxu0 0
      %1719 = vmatpush1.bf16.msra.mxu0 0
      %1720 = vmatprep.subr.bf16.mxu0 0
      %1721 = vmatpush1.bf16.msra.mxu0 0
      %1722 = vmatprep.subr.bf16.mxu0 0
      %1723 = vmatpush1.bf16.msra.mxu0 0
      %1724 = vmatprep.subr.bf16.mxu0 0
      %1725 = vmatpush1.bf16.msra.mxu0 %v1706
      %1726 = vmatprep.subr.bf16.mxu0 0
      %1727 = vmatpush1.bf16.msra.mxu0 %v1705
      %1728 = vmatprep.subr.bf16.mxu0 0
      %1729 = vmatpush2.bf16.msra.mxu0 0
      %1730 = vmatprep.subr.bf16.mxu0 0
      %1731 = vmatpush2.bf16.msra.mxu0 0
      %1732 = vmatprep.subr.bf16.mxu0 0
      %1733 = vmatpush2.bf16.msra.mxu0 0
      %1734 = vmatprep.subr.bf16.mxu0 0
      %1735 = vmatpush2.bf16.msra.mxu0 0
      %1736 = vmatprep.subr.bf16.mxu0 0
      %1737 = vmatpush2.bf16.msra.mxu0 0
      %1738 = vmatprep.subr.bf16.mxu0 0
      %1739 = vmatpush2.bf16.msra.mxu0 0
      %1740 = vmatprep.subr.bf16.mxu0 0
      %1741 = vmatpush2.bf16.msra.mxu0 0
      %1742 = vmatprep.subr.bf16.mxu0 0
      %1743 = vmatpush2.bf16.msra.mxu0 0
      %1744 = vmatprep.mubr.bf16.mxu0 0
      %1745 = vmatmul.mubr.bf16.gmra.mxu0 %v1710
      %v1746 = vpop.f32.mrf.mxu0
      %v1747 = vadd.f32 %v1687, %v1746
      %v1748 = vpop.f32.mrf.mxu0
      %v1749 = vpop.f32.mrf.mxu0
      %v1750 = vpop.f32.mrf.mxu0
      %1751 = vdwg.mxu0
      %s1752 = scalar_lea.vmem %s6, 32
      %v1753 = vld [vmem:[%s1752] sm:$0xf]
      %v1754 = vld [vmem:[%s1752 + $0x4] sm:$0xf]
      %v1755 = vld [vmem:[%s1752 + $0x8] sm:$0xf]
      %v1756 = vld [vmem:[%s1752 + $0xc] sm:$0xf]
      %v1757 = vrot.slane %v1627, 2
      %v1758 = vrot.slane %v1628, 1
      %v1759 = vsel %vm1631, %v1758, %v1757
      %v1760 = vsel %vm1634, %v1629, %v1759
      %v1761 = vpack.c.b16 %v1760, %v1760
      %v1766 = vunpack.c.l.b16 %v1753
      %v1767 = vunpack.c.l.b16 %v1754
      %v1768 = vunpack.c.l.b16 %v1755
      %v1769 = vunpack.c.l.b16 %v1756
      %v1770 = vpack.c.b16 %v1767, %v1766
      %v1771 = vpack.c.b16 %v1769, %v1768
      %v1775 = vsel %vm865, %v1761, 0
      %1777 = vmatprep.subr.bf16.mxu0 0
      %1778 = vmatpush1.bf16.msra.mxu0 0
      %1779 = vmatprep.subr.bf16.mxu0 0
      %1780 = vmatpush1.bf16.msra.mxu0 0
      %1781 = vmatprep.subr.bf16.mxu0 0
      %1782 = vmatpush1.bf16.msra.mxu0 0
      %1783 = vmatprep.subr.bf16.mxu0 0
      %1784 = vmatpush1.bf16.msra.mxu0 0
      %1785 = vmatprep.subr.bf16.mxu0 0
      %1786 = vmatpush1.bf16.msra.mxu0 0
      %1787 = vmatprep.subr.bf16.mxu0 0
      %1788 = vmatpush1.bf16.msra.mxu0 0
      %1789 = vmatprep.subr.bf16.mxu0 0
      %1790 = vmatpush1.bf16.msra.mxu0 %v1771
      %1791 = vmatprep.subr.bf16.mxu0 0
      %1792 = vmatpush1.bf16.msra.mxu0 %v1770
      %1793 = vmatprep.subr.bf16.mxu0 0
      %1794 = vmatpush2.bf16.msra.mxu0 0
      %1795 = vmatprep.subr.bf16.mxu0 0
      %1796 = vmatpush2.bf16.msra.mxu0 0
      %1797 = vmatprep.subr.bf16.mxu0 0
      %1798 = vmatpush2.bf16.msra.mxu0 0
      %1799 = vmatprep.subr.bf16.mxu0 0
      %1800 = vmatpush2.bf16.msra.mxu0 0
      %1801 = vmatprep.subr.bf16.mxu0 0
      %1802 = vmatpush2.bf16.msra.mxu0 0
      %1803 = vmatprep.subr.bf16.mxu0 0
      %1804 = vmatpush2.bf16.msra.mxu0 0
      %1805 = vmatprep.subr.bf16.mxu0 0
      %1806 = vmatpush2.bf16.msra.mxu0 0
      %1807 = vmatprep.subr.bf16.mxu0 0
      %1808 = vmatpush2.bf16.msra.mxu0 0
      %1809 = vmatprep.mubr.bf16.mxu0 0
      %1810 = vmatmul.mubr.bf16.gmra.mxu0 %v1775
      %v1811 = vpop.f32.mrf.mxu0
      %v1812 = vadd.f32 0.0, %v1811
      %v1813 = vpop.f32.mrf.mxu0
      %v1814 = vpop.f32.mrf.mxu0
      %v1815 = vpop.f32.mrf.mxu0
      %1816 = vdwg.mxu0
      %v1817 = vadd.f32 %v1747, %v1812
      %v1818 = vld [vmem:[%s439] sm:$0x7]
      %v1819 = vadd.f32 %v1817, %v1818
      %vm1820 = vcmask 256000
      %1821 = vst.msk [vmem:[%s446] sm:$0x7] %vm1820, %v1819
      %p1822 = scmp.lt.s32.totalorder %s23, 1
      %s1823 = scalar_select %p1822, %s23, 1
      %p1824 = scmp.lt.s32.totalorder %s24, 0
      %s1825 = scalar_select %p1824, %s24, 0
      %s1826 = sadd.s32 %s1825, %s1823
      %s1827 = smul.addr %s1826, 4
      %s1828 = scalar_lea.vmem %s8, %s1827
      // Predicated region
      $region53: #{tpu_custom_call.1} parent=51 // pred_check
        %p1829 = pneg %p246
      $region54: #{tpu_custom_call.1} parent=51 // pred_check_branch
        %1831 = sbr.rel (%p1829) target = $region56
      $region55: #{tpu_custom_call.1} parent=51 // pred_region
        _
      $region56: #{tpu_custom_call.1} parent=51 // pred_fallthru
        _
    $region52: #{tpu_custom_call.1} parent=5 // pred_fallthru
      _
    %p1832 = scmp.le.s32.totalorder 2, %s14
    // Predicated region
    $region57: #{tpu_custom_call.1} parent=5 // pred_check
      %p1833 = pneg %p1832
    $region58: #{tpu_custom_call.1} parent=5 // pred_check_branch
      %1835 = sbr.rel (%p1833) target = $region60
    $region59: #{tpu_custom_call.1} parent=5 // pred_region
      %s1836 = ssub.s32 %s14, 2
      // Predicated region
      $region61: #{tpu_custom_call.1} parent=59 // pred_check
        %p1837 = pneg %p252
      $region62: #{tpu_custom_call.1} parent=59 // pred_check_branch
        %1839 = sbr.rel (%p1837) target = $region64
      $region63: #{tpu_custom_call.1} parent=59 // pred_region
        %p1840 = scmp.lt.s32.totalorder %s25, 1
        %s1841 = scalar_select %p1840, %s25, 1
        %p1842 = scmp.lt.s32.totalorder %s26, 0
        %s1843 = scalar_select %p1842, %s26, 0
        %s1844 = sadd.s32 %s1843, %s1841
        %s1845 = smul.addr %s1844, 4
        %s1846 = scalar_lea.vmem %s8, %s1845
      $region64: #{tpu_custom_call.1} parent=59 // pred_fallthru
        _
    $region60: #{tpu_custom_call.1} parent=5 // pred_fallthru
      _
  $region6: #{tpu_custom_call.1} parent=0 // loop_footer
    %s18 = sadd.s32 1, %s14
  $region7: #{tpu_custom_call.1} parent=0 // loop_footer_branch
    %13 = sbr.rel target = $region3
  $region8: #{tpu_custom_call.1} parent=0 // loop_exit
    _

</llo_original>
